<compile_context>
chip_gen: v7x
topology: tpu7x:2x2x1
jax: 0.10.0
libtpu: 0.0.40
codegen_flags: <defaults>
</compile_context>

<pallas_src>
import functools

import jax
import jax.numpy as jnp
from jax import lax
from jax.experimental import pallas as pl
from jax.experimental.pallas import tpu as pltpu


# ----------------------------- host-side helpers -----------------------------

def fold_bn_into_conv(w, b, gamma, beta, mean, var, eps=1e-5):
    """Fold inference-mode BatchNorm1d into the preceding Conv1d (w: (Cout,Cin,K))."""
    s = gamma / jnp.sqrt(var + eps)                    # (Cout,)
    return w * s[:, None, None], (b - mean) * s + beta


def adaptive_avgpool_matrix(in_len, out_len):
    """(in_len, out_len) matrix implementing AdaptiveAvgPool1d exactly."""
    cols = []
    for f in range(out_len):
        start = (f * in_len) // out_len
        end = ((f + 1) * in_len + out_len - 1) // out_len   # ceil
        col = jnp.zeros((in_len,), jnp.float32).at[start:end].set(1.0 / (end - start))
        cols.append(col)
    return jnp.stack(cols, axis=1)


def block_diag_pool_matrix(pool_mat, tb):
    """Block-diagonal replication of the pool matrix for `tb` merged batch rows."""
    L, F = pool_mat.shape
    big = jnp.zeros((tb * L, tb * F), jnp.float32)
    for t in range(tb):
        big = big.at[t * L:(t + 1) * L, t * F:(t + 1) * F].set(pool_mat)
    return big


# --------------------------------- the kernel --------------------------------

def _inception_kernel(
    x_ref,                       # (1, Cin, TB*L)   batch rows merged into lanes
    w1_ref, b1_ref,              # (M0, Cin), (M0, 1)
    w2a_ref, b2a_ref,            # (M1, Cin), (M1, 1)
    w2b_ref, b2b_ref,            # (3, M2, M1), (M2, 1)
    w3a_ref, b3a_ref,            # (M3, Cin), (M3, 1)
    w3b_ref, b3b_ref,            # (5, M4, M3), (M4, 1)
    w4_ref, b4_ref,              # (M5, Cin), (M5, 1)
    pool_ref,                    # (TB*L, TB*F) block-diagonal adaptive-pool matrix
    o_ref,                       # (1, Ctot, TB*F)
    *, row_len,                  # static: L (per-row sequence length)
):
    x = x_ref[0]                 # (Cin, TB*L) resident in VMEM for all four branches
    tbl = x.shape[-1]

    # Per-row lane position (iota + const mod on the VPU); masks for the shifts we
    # actually use (±1 for k=3 conv & maxpool, ±2 for k=5 conv).
    pos = lax.broadcasted_iota(jnp.int32, (1, tbl), 1) % row_len
    valid = {s: (pos < (row_len - s)) if s > 0 else (pos >= -s)
             for s in (-2, -1, 1, 2)}

    def shifted(h, s, fill):
        # result[:, c] = h[:, c + s] within each batch row; `fill` at row edges.
        if s == 0:
            return h
        c = h.shape[0]
        pad = jnp.zeros((c, abs(s)), h.dtype)
        if s > 0:
            g = jnp.concatenate([h[:, s:], pad], axis=1)
        else:
            g = jnp.concatenate([pad, h[:, :s]], axis=1)
        return jnp.where(valid[s], g, fill)

    def conv1x1(w_ref, b_ref, inp):
        return jnp.dot(w_ref[...], inp, preferred_element_type=jnp.float32) + b_ref[...]

    def convK(w_ref, b_ref, inp):
        # w_ref: (K, Cout, Cmid) -> 'same' cross-correlation as K shifted matmuls.
        K = w_ref.shape[0]
        p = (K - 1) // 2
        acc = jnp.dot(w_ref[0], shifted(inp, -p, 0.0),
                      preferred_element_type=jnp.float32)
        for k in range(1, K):
            acc = acc + jnp.dot(w_ref[k], shifted(inp, k - p, 0.0),
                                preferred_element_type=jnp.float32)
        return acc + b_ref[...]

    relu = lambda v: jnp.maximum(v, 0.0)

    # branch 1: 1x1 conv (+folded BN) + relu
    y1 = relu(conv1x1(w1_ref, b1_ref, x))

    # branch 2: 1x1 -> 3-tap conv
    h2 = relu(conv1x1(w2a_ref, b2a_ref, x))
    y2 = relu(convK(w2b_ref, b2b_ref, h2))

    # branch 3: 1x1 -> 5-tap conv
    h3 = relu(conv1x1(w3a_ref, b3a_ref, x))
    y3 = relu(convK(w3b_ref, b3b_ref, h3))

    # branch 4: maxpool(k=3, s=1, p=1) -> 1x1 conv
    neg = float("-inf")
    m = jnp.maximum(jnp.maximum(shifted(x, -1, neg), x), shifted(x, 1, neg))
    y4 = relu(conv1x1(w4_ref, b4_ref, m))

    cat = jnp.concatenate([y1, y2, y3, y4], axis=0)          # (Ctot, TB*L)
    # AdaptiveAvgPool1d for all merged rows as a single lane-contraction MXU matmul.
    o_ref[0] = jnp.dot(cat, pool_ref[...], preferred_element_type=jnp.float32)


# --------------------------------- the wrapper --------------------------------

def inception_regressor_forward(x, kparams, features_len, batch_tile=None):
    """x: (B, Cin, L) f32; kparams: BN-folded, kernel-layout weights."""
    B, Cin, L = x.shape
    (w1, b1, w2a, b2a, w2b, b2b, w3a, b3a, w3b, b3b, w4, b4) = kparams
    c_total = w1.shape[0] + w2b.shape[1] + w3b.shape[1] + w4.shape[0]
    F = features_len

    tb = B if batch_tile is None else batch_tile
    assert B % tb == 0, "batch must be divisible by batch_tile"
    nb = B // tb

    # Merge `tb` batch rows into the lane dim (layout plumbing on a tiny array):
    # x_merged[i, c, t*L + l] = x[i*tb + t, c, l]
    x_merged = (x.reshape(nb, tb, Cin, L)
                 .transpose(0, 2, 1, 3)
                 .reshape(nb, Cin, tb * L))

    pool_big = block_diag_pool_matrix(adaptive_avgpool_matrix(L, F), tb)

    consts = (w1, b1, w2a, b2a, w2b, b2b, w3a, b3a, w3b, b3b, w4, b4, pool_big)

    def const_spec(a):
        nd = a.ndim
        # Constant block index -> Pallas DMAs the weight once and reuses it
        # across all batch-tile grid steps.
        return pl.BlockSpec(a.shape, lambda i, nd=nd: (0,) * nd)

    in_specs = [pl.BlockSpec((1, Cin, tb * L), lambda i: (i, 0, 0))] + [
        const_spec(a) for a in consts
    ]
    out_specs = pl.BlockSpec((1, c_total, tb * F), lambda i: (i, 0, 0))

    flops = 2 * B * L * (
        (w1.shape[0] + w2a.shape[0] + w3a.shape[0] + w4.shape[0]) * Cin
        + w2b.shape[0] * w2b.shape[1] * w2b.shape[2]
        + w3b.shape[0] * w3b.shape[1] * w3b.shape[2]
        + c_total * tb * F
    )
    bytes_accessed = 4 * (x.size + sum(int(a.size) for a in consts)
                          + B * c_total * F)

    out = pl.pallas_call(
        functools.partial(_inception_kernel, row_len=L),
        out_shape=jax.ShapeDtypeStruct((nb, c_total, tb * F), jnp.float32),
        grid=(nb,),
        in_specs=in_specs,
        out_specs=out_specs,
        compiler_params=pltpu.CompilerParams(
            dimension_semantics=("parallel",),
            vmem_limit_bytes=64 * 1024 * 1024,
        ),
        cost_estimate=pl.CostEstimate(
            flops=int(flops), transcendentals=0, bytes_accessed=int(bytes_accessed)
        ),
    )(x_merged, *consts)

    # (nb, Ctot, tb*F) -> (B, Ctot, F) -> (B, Ctot*F), matching torch x.reshape(B,-1).
    return (out.reshape(nb, c_total, tb, F)
               .transpose(0, 2, 1, 3)
               .reshape(B, c_total * F))


# ----------------------------- parameters & reference -------------------------

def init_raw_params(key, in_ch, mid):
    M0, M1, M2, M3, M4, M5 = mid
    keys = iter(jax.random.split(key, 64))

    def conv(cout, cin, k):
        w = 0.3 * jax.random.normal(next(keys), (cout, cin, k), jnp.float32)
        b = 0.1 * jax.random.normal(next(keys), (cout,), jnp.float32)
        return w, b

    def bn(cout):
        gamma = 1.0 + 0.1 * jax.random.normal(next(keys), (cout,), jnp.float32)
        beta = 0.1 * jax.random.normal(next(keys), (cout,), jnp.float32)
        mean = 0.1 * jax.random.normal(next(keys), (cout,), jnp.float32)
        var = 0.5 + jnp.abs(jax.random.normal(next(keys), (cout,), jnp.float32))
        return gamma, beta, mean, var

    p = {}
    p["conv1"], p["bn1"] = conv(M0, in_ch, 1), bn(M0)
    p["conv2a"], p["bn2a"] = conv(M1, in_ch, 1), bn(M1)
    p["conv2b"], p["bn2b"] = conv(M2, M1, 3), bn(M2)
    p["conv3a"], p["bn3a"] = conv(M3, in_ch, 1), bn(M3)
    p["conv3b"], p["bn3b"] = conv(M4, M3, 5), bn(M4)
    p["conv4"], p["bn4"] = conv(M5, in_ch, 1), bn(M5)
    return p


def kernel_params_from_raw(p):
    def fold(cn, bn):
        w, b = p[cn]
        return fold_bn_into_conv(w, b, *p[bn])

    w1, b1 = fold("conv1", "bn1")
    w2a, b2a = fold("conv2a", "bn2a")
    w2b, b2b = fold("conv2b", "bn2b")
    w3a, b3a = fold("conv3a", "bn3a")
    w3b, b3b = fold("conv3b", "bn3b")
    w4, b4 = fold("conv4", "bn4")

    as1x1 = lambda w: w[:, :, 0]                       # (Cout, Cin, 1) -> (Cout, Cin)
    asK = lambda w: jnp.transpose(w, (2, 0, 1))        # (Cout, Cin, K) -> (K, Cout, Cin)
    col = lambda b: b[:, None]                         # (Cout,) -> (Cout, 1)

    return (as1x1(w1), col(b1),
            as1x1(w2a), col(b2a),
            asK(w2b), col(b2b),
            as1x1(w3a), col(b3a),
            asK(w3b), col(b3b),
            as1x1(w4), col(b4))


def _conv_bn_relu_ref(x, w, b, gamma, beta, mean, var, pad, eps=1e-5):
    B, Cin, L = x.shape
    Cout, _, K = w.shape
    xp = jnp.pad(x, ((0, 0), (0, 0), (pad, pad)))
    y = jnp.broadcast_to(b[None, :, None], (B, Cout, L)).astype(jnp.float32)
    for k in range(K):
        y = y + jnp.einsum("oc,bcl->bol", w[:, :, k], xp[:, :, k:k + L])
    y = (gamma[None, :, None] * (y - mean[None, :, None])
         / jnp.sqrt(var + eps)[None, :, None] + beta[None, :, None])
    return jnp.maximum(y, 0.0)


def _maxpool3_ref(x):
    B, C, L = x.shape
    xp = jnp.pad(x, ((0, 0), (0, 0), (1, 1)), constant_values=-jnp.inf)
    return jnp.maximum(jnp.maximum(xp[:, :, 0:L], xp[:, :, 1:L + 1]), xp[:, :, 2:L + 2])


def reference_forward(x, p, features_len):
    y1 = _conv_bn_relu_ref(x, *p["conv1"], *p["bn1"], pad=0)
    h2 = _conv_bn_relu_ref(x, *p["conv2a"], *p["bn2a"], pad=0)
    y2 = _conv_bn_relu_ref(h2, *p["conv2b"], *p["bn2b"], pad=1)
    h3 = _conv_bn_relu_ref(x, *p["conv3a"], *p["bn3a"], pad=0)
    y3 = _conv_bn_relu_ref(h3, *p["conv3b"], *p["bn3b"], pad=2)
    y4 = _conv_bn_relu_ref(_maxpool3_ref(x), *p["conv4"], *p["bn4"], pad=0)
    cat = jnp.concatenate([y1, y2, y3, y4], axis=1)
    pooled = jnp.einsum("bcl,lf->bcf", cat,
                        adaptive_avgpool_matrix(x.shape[-1], features_len))
    return pooled.reshape(x.shape[0], -1)


# ------------------------------------ demo ------------------------------------

if __name__ == "__main__":
    B, Cin, L = 2, 4, 128           # L chosen lane-dense (multiple of 128)
    mid_channels = (8, 8, 8, 8, 8, 8)
    features_len = 4

    key = jax.random.PRNGKey(0)
    kx, kp = jax.random.split(key)
    x = jax.random.normal(kx, (B, Cin, L), dtype=jnp.float32)

    raw = init_raw_params(kp, Cin, mid_channels)
    kparams = kernel_params_from_raw(raw)

    out = inception_regressor_forward(x, kparams, features_len)
    out = jax.block_until_ready(out)

    ref = reference_forward(x, raw, features_len)
    c_total = mid_channels[0] + mid_channels[2] + mid_channels[4] + mid_channels[5]
    assert out.shape == (B, c_total * features_len), out.shape
    assert jnp.allclose(out, ref, atol=2e-2, rtol=2e-2), float(jnp.max(jnp.abs(out - ref)))

    print("KERNEL_OK")
</pallas_src>

<mosaic_0001>
module attributes {stable_mosaic.version = 11 : i64} {
  func.func @_inception_kernel(%arg0: i32, %arg1: memref<1x4x256xf32, #tpu.memory_space<vmem>>, %arg2: memref<8x4xf32, #tpu.memory_space<vmem>>, %arg3: memref<8x1xf32, #tpu.memory_space<vmem>>, %arg4: memref<8x4xf32, #tpu.memory_space<vmem>>, %arg5: memref<8x1xf32, #tpu.memory_space<vmem>>, %arg6: memref<3x8x8xf32, #tpu.memory_space<vmem>>, %arg7: memref<8x1xf32, #tpu.memory_space<vmem>>, %arg8: memref<8x4xf32, #tpu.memory_space<vmem>>, %arg9: memref<8x1xf32, #tpu.memory_space<vmem>>, %arg10: memref<5x8x8xf32, #tpu.memory_space<vmem>>, %arg11: memref<8x1xf32, #tpu.memory_space<vmem>>, %arg12: memref<8x4xf32, #tpu.memory_space<vmem>>, %arg13: memref<8x1xf32, #tpu.memory_space<vmem>>, %arg14: memref<256x8xf32, #tpu.memory_space<vmem>>, %arg15: memref<1x32x8xf32, #tpu.memory_space<vmem>>) attributes {dimension_semantics = [#tpu.dimension_semantics<parallel>], iteration_bounds = array<i64: 1>, scalar_prefetch = 0 : i64, scratch_operands = 0 : i64, tpu.core_type = #tpu.core_type<tc>, window_params = [{transform_indices = @transform_0, window_bounds = array<i64: 1, 4, 256>}, {pipeline_mode = #tpu.pipeline_mode<synchronous>, transform_indices = @transform_1, window_bounds = array<i64: 8, 4>}, {pipeline_mode = #tpu.pipeline_mode<synchronous>, transform_indices = @transform_2, window_bounds = array<i64: 8, 1>}, {pipeline_mode = #tpu.pipeline_mode<synchronous>, transform_indices = @transform_3, window_bounds = array<i64: 8, 4>}, {pipeline_mode = #tpu.pipeline_mode<synchronous>, transform_indices = @transform_4, window_bounds = array<i64: 8, 1>}, {pipeline_mode = #tpu.pipeline_mode<synchronous>, transform_indices = @transform_5, window_bounds = array<i64: 3, 8, 8>}, {pipeline_mode = #tpu.pipeline_mode<synchronous>, transform_indices = @transform_6, window_bounds = array<i64: 8, 1>}, {pipeline_mode = #tpu.pipeline_mode<synchronous>, transform_indices = @transform_7, window_bounds = array<i64: 8, 4>}, {pipeline_mode = #tpu.pipeline_mode<synchronous>, transform_indices = @transform_8, window_bounds = array<i64: 8, 1>}, {pipeline_mode = #tpu.pipeline_mode<synchronous>, transform_indices = @transform_9, window_bounds = array<i64: 5, 8, 8>}, {pipeline_mode = #tpu.pipeline_mode<synchronous>, transform_indices = @transform_10, window_bounds = array<i64: 8, 1>}, {pipeline_mode = #tpu.pipeline_mode<synchronous>, transform_indices = @transform_11, window_bounds = array<i64: 8, 4>}, {pipeline_mode = #tpu.pipeline_mode<synchronous>, transform_indices = @transform_12, window_bounds = array<i64: 8, 1>}, {pipeline_mode = #tpu.pipeline_mode<synchronous>, transform_indices = @transform_13, window_bounds = array<i64: 256, 8>}, {transform_indices = @transform_14, window_bounds = array<i64: 1, 32, 8>}]} {
    %c0 = arith.constant 0 : index
    %c0_0 = arith.constant 0 : index
    %c0_1 = arith.constant 0 : index
    %0 = vector.load %arg1[%c0, %c0_0, %c0_1] : memref<1x4x256xf32, #tpu.memory_space<vmem>>, vector<1x4x256xf32>
    %1 = vector.shape_cast %0 : vector<1x4x256xf32> to vector<4x256xf32>
    %2 = tpu.iota {dimensions = array<i32: 1>} : vector<1x256xi32>
    %c128_i32 = arith.constant 128 : i32
    %c0_i32 = arith.constant 0 : i32
    %3 = arith.cmpi eq, %c128_i32, %c0_i32 : i32
    %c1_i32 = arith.constant 1 : i32
    %4 = arith.select %3, %c1_i32, %c128_i32 : i32
    %5 = vector.broadcast %4 : i32 to vector<1x256xi32>
    %6 = arith.remsi %2, %5 : vector<1x256xi32>
    %c0_i32_2 = arith.constant 0 : i32
    %7 = vector.broadcast %c0_i32_2 : i32 to vector<1x256xi32>
    %8 = arith.cmpi ne, %6, %7 : vector<1x256xi32>
    %c0_i32_3 = arith.constant 0 : i32
    %9 = vector.broadcast %c0_i32_3 : i32 to vector<1x256xi32>
    %10 = arith.cmpi slt, %6, %9 : vector<1x256xi32>
    %c0_i32_4 = arith.constant 0 : i32
    %11 = arith.cmpi slt, %4, %c0_i32_4 : i32
    %12 = vector.broadcast %11 : i1 to vector<1x256xi1>
    %13 = vector.broadcast %12 : vector<1x256xi1> to vector<1x256xi1>
    %14 = arith.xori %10, %13 : vector<1x256xi1>
    %15 = arith.andi %14, %8 : vector<1x256xi1>
    %16 = vector.broadcast %4 : i32 to vector<1x256xi32>
    %17 = arith.addi %6, %16 : vector<1x256xi32>
    %18 = arith.select %15, %17, %6 : vector<1x256xi1>, vector<1x256xi32>
    %c2_i32 = arith.constant 2 : i32
    %19 = vector.broadcast %c2_i32 : i32 to vector<1x256xi32>
    %20 = arith.cmpi sge, %18, %19 : vector<1x256xi32>
    %c1_i32_5 = arith.constant 1 : i32
    %21 = vector.broadcast %c1_i32_5 : i32 to vector<1x256xi32>
    %22 = arith.cmpi sge, %18, %21 : vector<1x256xi32>
    %c127_i32 = arith.constant 127 : i32
    %23 = vector.broadcast %c127_i32 : i32 to vector<1x256xi32>
    %24 = arith.cmpi slt, %18, %23 : vector<1x256xi32>
    %c126_i32 = arith.constant 126 : i32
    %25 = vector.broadcast %c126_i32 : i32 to vector<1x256xi32>
    %26 = arith.cmpi slt, %18, %25 : vector<1x256xi32>
    %c0_6 = arith.constant 0 : index
    %c0_7 = arith.constant 0 : index
    %27 = vector.load %arg2[%c0_6, %c0_7] : memref<8x4xf32, #tpu.memory_space<vmem>>, vector<8x4xf32>
    %cst = arith.constant dense<0.000000e+00> : vector<8x256xf32>
    %28 = tpu.matmul %27, %1, %cst {dimension_numbers = #tpu.dot_dimension_numbers<[1], [0], [0], [1], [0, 0, 1, 1], [], []>} : vector<8x4xf32>, vector<4x256xf32>, vector<8x256xf32> -> vector<8x256xf32>
    %c0_8 = arith.constant 0 : index
    %c0_9 = arith.constant 0 : index
    %29 = vector.load %arg3[%c0_8, %c0_9] : memref<8x1xf32, #tpu.memory_space<vmem>>, vector<8x1xf32>
    %30 = vector.broadcast %29 : vector<8x1xf32> to vector<8x256xf32>
    %31 = arith.addf %28, %30 : vector<8x256xf32>
    %cst_10 = arith.constant 0.000000e+00 : f32
    %32 = vector.broadcast %cst_10 : f32 to vector<8x256xf32>
    %33 = arith.maximumf %31, %32 : vector<8x256xf32>
    %c0_11 = arith.constant 0 : index
    %c0_12 = arith.constant 0 : index
    %34 = vector.load %arg4[%c0_11, %c0_12] : memref<8x4xf32, #tpu.memory_space<vmem>>, vector<8x4xf32>
    %cst_13 = arith.constant dense<0.000000e+00> : vector<8x256xf32>
    %35 = tpu.matmul %34, %1, %cst_13 {dimension_numbers = #tpu.dot_dimension_numbers<[1], [0], [0], [1], [0, 0, 1, 1], [], []>} : vector<8x4xf32>, vector<4x256xf32>, vector<8x256xf32> -> vector<8x256xf32>
    %c0_14 = arith.constant 0 : index
    %c0_15 = arith.constant 0 : index
    %36 = vector.load %arg5[%c0_14, %c0_15] : memref<8x1xf32, #tpu.memory_space<vmem>>, vector<8x1xf32>
    %37 = vector.broadcast %36 : vector<8x1xf32> to vector<8x256xf32>
    %38 = arith.addf %35, %37 : vector<8x256xf32>
    %cst_16 = arith.constant 0.000000e+00 : f32
    %39 = vector.broadcast %cst_16 : f32 to vector<8x256xf32>
    %40 = arith.maximumf %38, %39 : vector<8x256xf32>
    %c0_17 = arith.constant 0 : index
    %c0_18 = arith.constant 0 : index
    %c0_19 = arith.constant 0 : index
    %41 = vector.load %arg6[%c0_17, %c0_18, %c0_19] : memref<3x8x8xf32, #tpu.memory_space<vmem>>, vector<1x8x8xf32>
    %42 = vector.shape_cast %41 : vector<1x8x8xf32> to vector<8x8xf32>
    %cst_20 = arith.constant 0.000000e+00 : f32
    %43 = vector.broadcast %cst_20 : f32 to vector<8x1xf32>
    %44 = vector.extract_strided_slice %40 {offsets = [0, 0], sizes = [8, 255], strides = [1, 1]} : vector<8x256xf32> to vector<8x255xf32>
    %45 = tpu.concatenate %43, %44 in 1 : vector<8x1xf32>, vector<8x255xf32> -> vector<8x256xf32>
    %cst_21 = arith.constant 0.000000e+00 : f32
    %46 = vector.shape_cast %22 : vector<1x256xi1> to vector<1x256xi1>
    %47 = vector.broadcast %46 : vector<1x256xi1> to vector<8x256xi1>
    %48 = vector.broadcast %cst_21 : f32 to vector<8x256xf32>
    %49 = arith.select %47, %45, %48 : vector<8x256xi1>, vector<8x256xf32>
    %cst_22 = arith.constant dense<0.000000e+00> : vector<8x256xf32>
    %50 = tpu.matmul %42, %49, %cst_22 {dimension_numbers = #tpu.dot_dimension_numbers<[1], [0], [0], [1], [0, 0, 1, 1], [], []>} : vector<8x8xf32>, vector<8x256xf32>, vector<8x256xf32> -> vector<8x256xf32>
    %c1 = arith.constant 1 : index
    %c0_23 = arith.constant 0 : index
    %c0_24 = arith.constant 0 : index
    %51 = vector.load %arg6[%c1, %c0_23, %c0_24] : memref<3x8x8xf32, #tpu.memory_space<vmem>>, vector<1x8x8xf32>
    %52 = vector.shape_cast %51 : vector<1x8x8xf32> to vector<8x8xf32>
    %cst_25 = arith.constant dense<0.000000e+00> : vector<8x256xf32>
    %53 = tpu.matmul %52, %40, %cst_25 {dimension_numbers = #tpu.dot_dimension_numbers<[1], [0], [0], [1], [0, 0, 1, 1], [], []>} : vector<8x8xf32>, vector<8x256xf32>, vector<8x256xf32> -> vector<8x256xf32>
    %54 = arith.addf %50, %53 : vector<8x256xf32>
    %c2 = arith.constant 2 : index
    %c0_26 = arith.constant 0 : index
    %c0_27 = arith.constant 0 : index
    %55 = vector.load %arg6[%c2, %c0_26, %c0_27] : memref<3x8x8xf32, #tpu.memory_space<vmem>>, vector<1x8x8xf32>
    %56 = vector.shape_cast %55 : vector<1x8x8xf32> to vector<8x8xf32>
    %cst_28 = arith.constant 0.000000e+00 : f32
    %57 = vector.broadcast %cst_28 : f32 to vector<8x1xf32>
    %58 = vector.extract_strided_slice %40 {offsets = [0, 1], sizes = [8, 255], strides = [1, 1]} : vector<8x256xf32> to vector<8x255xf32>
    %59 = tpu.concatenate %58, %57 in 1 : vector<8x255xf32>, vector<8x1xf32> -> vector<8x256xf32>
    %cst_29 = arith.constant 0.000000e+00 : f32
    %60 = vector.shape_cast %24 : vector<1x256xi1> to vector<1x256xi1>
    %61 = vector.broadcast %60 : vector<1x256xi1> to vector<8x256xi1>
    %62 = vector.broadcast %cst_29 : f32 to vector<8x256xf32>
    %63 = arith.select %61, %59, %62 : vector<8x256xi1>, vector<8x256xf32>
    %cst_30 = arith.constant dense<0.000000e+00> : vector<8x256xf32>
    %64 = tpu.matmul %56, %63, %cst_30 {dimension_numbers = #tpu.dot_dimension_numbers<[1], [0], [0], [1], [0, 0, 1, 1], [], []>} : vector<8x8xf32>, vector<8x256xf32>, vector<8x256xf32> -> vector<8x256xf32>
    %65 = arith.addf %54, %64 : vector<8x256xf32>
    %c0_31 = arith.constant 0 : index
    %c0_32 = arith.constant 0 : index
    %66 = vector.load %arg7[%c0_31, %c0_32] : memref<8x1xf32, #tpu.memory_space<vmem>>, vector<8x1xf32>
    %67 = vector.broadcast %66 : vector<8x1xf32> to vector<8x256xf32>
    %68 = arith.addf %65, %67 : vector<8x256xf32>
    %cst_33 = arith.constant 0.000000e+00 : f32
    %69 = vector.broadcast %cst_33 : f32 to vector<8x256xf32>
    %70 = arith.maximumf %68, %69 : vector<8x256xf32>
    %c0_34 = arith.constant 0 : index
    %c0_35 = arith.constant 0 : index
    %71 = vector.load %arg8[%c0_34, %c0_35] : memref<8x4xf32, #tpu.memory_space<vmem>>, vector<8x4xf32>
    %cst_36 = arith.constant dense<0.000000e+00> : vector<8x256xf32>
    %72 = tpu.matmul %71, %1, %cst_36 {dimension_numbers = #tpu.dot_dimension_numbers<[1], [0], [0], [1], [0, 0, 1, 1], [], []>} : vector<8x4xf32>, vector<4x256xf32>, vector<8x256xf32> -> vector<8x256xf32>
    %c0_37 = arith.constant 0 : index
    %c0_38 = arith.constant 0 : index
    %73 = vector.load %arg9[%c0_37, %c0_38] : memref<8x1xf32, #tpu.memory_space<vmem>>, vector<8x1xf32>
    %74 = vector.broadcast %73 : vector<8x1xf32> to vector<8x256xf32>
    %75 = arith.addf %72, %74 : vector<8x256xf32>
    %cst_39 = arith.constant 0.000000e+00 : f32
    %76 = vector.broadcast %cst_39 : f32 to vector<8x256xf32>
    %77 = arith.maximumf %75, %76 : vector<8x256xf32>
    %c0_40 = arith.constant 0 : index
    %c0_41 = arith.constant 0 : index
    %c0_42 = arith.constant 0 : index
    %78 = vector.load %arg10[%c0_40, %c0_41, %c0_42] : memref<5x8x8xf32, #tpu.memory_space<vmem>>, vector<1x8x8xf32>
    %79 = vector.shape_cast %78 : vector<1x8x8xf32> to vector<8x8xf32>
    %cst_43 = arith.constant 0.000000e+00 : f32
    %80 = vector.broadcast %cst_43 : f32 to vector<8x2xf32>
    %81 = vector.extract_strided_slice %77 {offsets = [0, 0], sizes = [8, 254], strides = [1, 1]} : vector<8x256xf32> to vector<8x254xf32>
    %82 = tpu.concatenate %80, %81 in 1 : vector<8x2xf32>, vector<8x254xf32> -> vector<8x256xf32>
    %cst_44 = arith.constant 0.000000e+00 : f32
    %83 = vector.shape_cast %20 : vector<1x256xi1> to vector<1x256xi1>
    %84 = vector.broadcast %83 : vector<1x256xi1> to vector<8x256xi1>
    %85 = vector.broadcast %cst_44 : f32 to vector<8x256xf32>
    %86 = arith.select %84, %82, %85 : vector<8x256xi1>, vector<8x256xf32>
    %cst_45 = arith.constant dense<0.000000e+00> : vector<8x256xf32>
    %87 = tpu.matmul %79, %86, %cst_45 {dimension_numbers = #tpu.dot_dimension_numbers<[1], [0], [0], [1], [0, 0, 1, 1], [], []>} : vector<8x8xf32>, vector<8x256xf32>, vector<8x256xf32> -> vector<8x256xf32>
    %c1_46 = arith.constant 1 : index
    %c0_47 = arith.constant 0 : index
    %c0_48 = arith.constant 0 : index
    %88 = vector.load %arg10[%c1_46, %c0_47, %c0_48] : memref<5x8x8xf32, #tpu.memory_space<vmem>>, vector<1x8x8xf32>
    %89 = vector.shape_cast %88 : vector<1x8x8xf32> to vector<8x8xf32>
    %cst_49 = arith.constant 0.000000e+00 : f32
    %90 = vector.broadcast %cst_49 : f32 to vector<8x1xf32>
    %91 = vector.extract_strided_slice %77 {offsets = [0, 0], sizes = [8, 255], strides = [1, 1]} : vector<8x256xf32> to vector<8x255xf32>
    %92 = tpu.concatenate %90, %91 in 1 : vector<8x1xf32>, vector<8x255xf32> -> vector<8x256xf32>
    %cst_50 = arith.constant 0.000000e+00 : f32
    %93 = vector.shape_cast %22 : vector<1x256xi1> to vector<1x256xi1>
    %94 = vector.broadcast %93 : vector<1x256xi1> to vector<8x256xi1>
    %95 = vector.broadcast %cst_50 : f32 to vector<8x256xf32>
    %96 = arith.select %94, %92, %95 : vector<8x256xi1>, vector<8x256xf32>
    %cst_51 = arith.constant dense<0.000000e+00> : vector<8x256xf32>
    %97 = tpu.matmul %89, %96, %cst_51 {dimension_numbers = #tpu.dot_dimension_numbers<[1], [0], [0], [1], [0, 0, 1, 1], [], []>} : vector<8x8xf32>, vector<8x256xf32>, vector<8x256xf32> -> vector<8x256xf32>
    %98 = arith.addf %87, %97 : vector<8x256xf32>
    %c2_52 = arith.constant 2 : index
    %c0_53 = arith.constant 0 : index
    %c0_54 = arith.constant 0 : index
    %99 = vector.load %arg10[%c2_52, %c0_53, %c0_54] : memref<5x8x8xf32, #tpu.memory_space<vmem>>, vector<1x8x8xf32>
    %100 = vector.shape_cast %99 : vector<1x8x8xf32> to vector<8x8xf32>
    %cst_55 = arith.constant dense<0.000000e+00> : vector<8x256xf32>
    %101 = tpu.matmul %100, %77, %cst_55 {dimension_numbers = #tpu.dot_dimension_numbers<[1], [0], [0], [1], [0, 0, 1, 1], [], []>} : vector<8x8xf32>, vector<8x256xf32>, vector<8x256xf32> -> vector<8x256xf32>
    %102 = arith.addf %98, %101 : vector<8x256xf32>
    %c3 = arith.constant 3 : index
    %c0_56 = arith.constant 0 : index
    %c0_57 = arith.constant 0 : index
    %103 = vector.load %arg10[%c3, %c0_56, %c0_57] : memref<5x8x8xf32, #tpu.memory_space<vmem>>, vector<1x8x8xf32>
    %104 = vector.shape_cast %103 : vector<1x8x8xf32> to vector<8x8xf32>
    %cst_58 = arith.constant 0.000000e+00 : f32
    %105 = vector.broadcast %cst_58 : f32 to vector<8x1xf32>
    %106 = vector.extract_strided_slice %77 {offsets = [0, 1], sizes = [8, 255], strides = [1, 1]} : vector<8x256xf32> to vector<8x255xf32>
    %107 = tpu.concatenate %106, %105 in 1 : vector<8x255xf32>, vector<8x1xf32> -> vector<8x256xf32>
    %cst_59 = arith.constant 0.000000e+00 : f32
    %108 = vector.shape_cast %24 : vector<1x256xi1> to vector<1x256xi1>
    %109 = vector.broadcast %108 : vector<1x256xi1> to vector<8x256xi1>
    %110 = vector.broadcast %cst_59 : f32 to vector<8x256xf32>
    %111 = arith.select %109, %107, %110 : vector<8x256xi1>, vector<8x256xf32>
    %cst_60 = arith.constant dense<0.000000e+00> : vector<8x256xf32>
    %112 = tpu.matmul %104, %111, %cst_60 {dimension_numbers = #tpu.dot_dimension_numbers<[1], [0], [0], [1], [0, 0, 1, 1], [], []>} : vector<8x8xf32>, vector<8x256xf32>, vector<8x256xf32> -> vector<8x256xf32>
    %113 = arith.addf %102, %112 : vector<8x256xf32>
    %c4 = arith.constant 4 : index
    %c0_61 = arith.constant 0 : index
    %c0_62 = arith.constant 0 : index
    %114 = vector.load %arg10[%c4, %c0_61, %c0_62] : memref<5x8x8xf32, #tpu.memory_space<vmem>>, vector<1x8x8xf32>
    %115 = vector.shape_cast %114 : vector<1x8x8xf32> to vector<8x8xf32>
    %cst_63 = arith.constant 0.000000e+00 : f32
    %116 = vector.broadcast %cst_63 : f32 to vector<8x2xf32>
    %117 = vector.extract_strided_slice %77 {offsets = [0, 2], sizes = [8, 254], strides = [1, 1]} : vector<8x256xf32> to vector<8x254xf32>
    %118 = tpu.concatenate %117, %116 in 1 : vector<8x254xf32>, vector<8x2xf32> -> vector<8x256xf32>
    %cst_64 = arith.constant 0.000000e+00 : f32
    %119 = vector.shape_cast %26 : vector<1x256xi1> to vector<1x256xi1>
    %120 = vector.broadcast %119 : vector<1x256xi1> to vector<8x256xi1>
    %121 = vector.broadcast %cst_64 : f32 to vector<8x256xf32>
    %122 = arith.select %120, %118, %121 : vector<8x256xi1>, vector<8x256xf32>
    %cst_65 = arith.constant dense<0.000000e+00> : vector<8x256xf32>
    %123 = tpu.matmul %115, %122, %cst_65 {dimension_numbers = #tpu.dot_dimension_numbers<[1], [0], [0], [1], [0, 0, 1, 1], [], []>} : vector<8x8xf32>, vector<8x256xf32>, vector<8x256xf32> -> vector<8x256xf32>
    %124 = arith.addf %113, %123 : vector<8x256xf32>
    %c0_66 = arith.constant 0 : index
    %c0_67 = arith.constant 0 : index
    %125 = vector.load %arg11[%c0_66, %c0_67] : memref<8x1xf32, #tpu.memory_space<vmem>>, vector<8x1xf32>
    %126 = vector.broadcast %125 : vector<8x1xf32> to vector<8x256xf32>
    %127 = arith.addf %124, %126 : vector<8x256xf32>
    %cst_68 = arith.constant 0.000000e+00 : f32
    %128 = vector.broadcast %cst_68 : f32 to vector<8x256xf32>
    %129 = arith.maximumf %127, %128 : vector<8x256xf32>
    %cst_69 = arith.constant 0.000000e+00 : f32
    %130 = vector.broadcast %cst_69 : f32 to vector<4x1xf32>
    %131 = vector.extract_strided_slice %1 {offsets = [0, 0], sizes = [4, 255], strides = [1, 1]} : vector<4x256xf32> to vector<4x255xf32>
    %132 = tpu.concatenate %130, %131 in 1 : vector<4x1xf32>, vector<4x255xf32> -> vector<4x256xf32>
    %cst_70 = arith.constant 0xFF800000 : f32
    %133 = vector.shape_cast %22 : vector<1x256xi1> to vector<1x256xi1>
    %134 = vector.broadcast %133 : vector<1x256xi1> to vector<4x256xi1>
    %135 = vector.broadcast %cst_70 : f32 to vector<4x256xf32>
    %136 = arith.select %134, %132, %135 : vector<4x256xi1>, vector<4x256xf32>
    %137 = arith.maximumf %136, %1 : vector<4x256xf32>
    %cst_71 = arith.constant 0.000000e+00 : f32
    %138 = vector.broadcast %cst_71 : f32 to vector<4x1xf32>
    %139 = vector.extract_strided_slice %1 {offsets = [0, 1], sizes = [4, 255], strides = [1, 1]} : vector<4x256xf32> to vector<4x255xf32>
    %140 = tpu.concatenate %139, %138 in 1 : vector<4x255xf32>, vector<4x1xf32> -> vector<4x256xf32>
    %cst_72 = arith.constant 0xFF800000 : f32
    %141 = vector.shape_cast %24 : vector<1x256xi1> to vector<1x256xi1>
    %142 = vector.broadcast %141 : vector<1x256xi1> to vector<4x256xi1>
    %143 = vector.broadcast %cst_72 : f32 to vector<4x256xf32>
    %144 = arith.select %142, %140, %143 : vector<4x256xi1>, vector<4x256xf32>
    %145 = arith.maximumf %137, %144 : vector<4x256xf32>
    %c0_73 = arith.constant 0 : index
    %c0_74 = arith.constant 0 : index
    %146 = vector.load %arg12[%c0_73, %c0_74] : memref<8x4xf32, #tpu.memory_space<vmem>>, vector<8x4xf32>
    %cst_75 = arith.constant dense<0.000000e+00> : vector<8x256xf32>
    %147 = tpu.matmul %146, %145, %cst_75 {dimension_numbers = #tpu.dot_dimension_numbers<[1], [0], [0], [1], [0, 0, 1, 1], [], []>} : vector<8x4xf32>, vector<4x256xf32>, vector<8x256xf32> -> vector<8x256xf32>
    %c0_76 = arith.constant 0 : index
    %c0_77 = arith.constant 0 : index
    %148 = vector.load %arg13[%c0_76, %c0_77] : memref<8x1xf32, #tpu.memory_space<vmem>>, vector<8x1xf32>
    %149 = vector.broadcast %148 : vector<8x1xf32> to vector<8x256xf32>
    %150 = arith.addf %147, %149 : vector<8x256xf32>
    %cst_78 = arith.constant 0.000000e+00 : f32
    %151 = vector.broadcast %cst_78 : f32 to vector<8x256xf32>
    %152 = arith.maximumf %150, %151 : vector<8x256xf32>
    %153 = tpu.concatenate %33, %70, %129, %152 in 0 : vector<8x256xf32>, vector<8x256xf32>, vector<8x256xf32>, vector<8x256xf32> -> vector<32x256xf32>
    %c0_79 = arith.constant 0 : index
    %c0_80 = arith.constant 0 : index
    %154 = vector.load %arg14[%c0_79, %c0_80] : memref<256x8xf32, #tpu.memory_space<vmem>>, vector<256x8xf32>
    %cst_81 = arith.constant dense<0.000000e+00> : vector<32x8xf32>
    %155 = tpu.matmul %153, %154, %cst_81 {dimension_numbers = #tpu.dot_dimension_numbers<[1], [0], [0], [1], [0, 0, 1, 1], [], []>} : vector<32x256xf32>, vector<256x8xf32>, vector<32x8xf32> -> vector<32x8xf32>
    %c0_82 = arith.constant 0 : index
    %c0_83 = arith.constant 0 : index
    %c0_84 = arith.constant 0 : index
    %156 = vector.load %arg15[%c0_82, %c0_83, %c0_84] : memref<1x32x8xf32, #tpu.memory_space<vmem>>, vector<1x32x8xf32>
    %157 = vector.shape_cast %156 : vector<1x32x8xf32> to vector<32x8xf32>
    %158 = vector.shape_cast %155 : vector<32x8xf32> to vector<1x32x8xf32>
    tpu.vector_store %arg15[%c0_82, %c0_83, %c0_84], %158 {strides = array<i32>} : memref<1x32x8xf32, #tpu.memory_space<vmem>>, vector<1x32x8xf32>,
    return
  }
  func.func @transform_0(%arg0: i32) -> (i32, i32, i32) {
    %c0_i32 = arith.constant 0 : i32
    %c0_i32_0 = arith.constant 0 : i32
    %c0_i32_1 = arith.constant 0 : i32
    return %arg0, %c0_i32, %c0_i32_0 : i32, i32, i32
  }
  func.func @transform_1(%arg0: i32) -> (i32, i32) {
    %c0_i32 = arith.constant 0 : i32
    %c0_i32_0 = arith.constant 0 : i32
    %c0_i32_1 = arith.constant 0 : i32
    return %c0_i32, %c0_i32_0 : i32, i32
  }
  func.func @transform_2(%arg0: i32) -> (i32, i32) {
    %c0_i32 = arith.constant 0 : i32
    %c0_i32_0 = arith.constant 0 : i32
    %c0_i32_1 = arith.constant 0 : i32
    return %c0_i32, %c0_i32_0 : i32, i32
  }
  func.func @transform_3(%arg0: i32) -> (i32, i32) {
    %c0_i32 = arith.constant 0 : i32
    %c0_i32_0 = arith.constant 0 : i32
    %c0_i32_1 = arith.constant 0 : i32
    return %c0_i32, %c0_i32_0 : i32, i32
  }
  func.func @transform_4(%arg0: i32) -> (i32, i32) {
    %c0_i32 = arith.constant 0 : i32
    %c0_i32_0 = arith.constant 0 : i32
    %c0_i32_1 = arith.constant 0 : i32
    return %c0_i32, %c0_i32_0 : i32, i32
  }
  func.func @transform_5(%arg0: i32) -> (i32, i32, i32) {
    %c0_i32 = arith.constant 0 : i32
    %c0_i32_0 = arith.constant 0 : i32
    %c0_i32_1 = arith.constant 0 : i32
    %c0_i32_2 = arith.constant 0 : i32
    return %c0_i32, %c0_i32_0, %c0_i32_1 : i32, i32, i32
  }
  func.func @transform_6(%arg0: i32) -> (i32, i32) {
    %c0_i32 = arith.constant 0 : i32
    %c0_i32_0 = arith.constant 0 : i32
    %c0_i32_1 = arith.constant 0 : i32
    return %c0_i32, %c0_i32_0 : i32, i32
  }
  func.func @transform_7(%arg0: i32) -> (i32, i32) {
    %c0_i32 = arith.constant 0 : i32
    %c0_i32_0 = arith.constant 0 : i32
    %c0_i32_1 = arith.constant 0 : i32
    return %c0_i32, %c0_i32_0 : i32, i32
  }
  func.func @transform_8(%arg0: i32) -> (i32, i32) {
    %c0_i32 = arith.constant 0 : i32
    %c0_i32_0 = arith.constant 0 : i32
    %c0_i32_1 = arith.constant 0 : i32
    return %c0_i32, %c0_i32_0 : i32, i32
  }
  func.func @transform_9(%arg0: i32) -> (i32, i32, i32) {
    %c0_i32 = arith.constant 0 : i32
    %c0_i32_0 = arith.constant 0 : i32
    %c0_i32_1 = arith.constant 0 : i32
    %c0_i32_2 = arith.constant 0 : i32
    return %c0_i32, %c0_i32_0, %c0_i32_1 : i32, i32, i32
  }
  func.func @transform_10(%arg0: i32) -> (i32, i32) {
    %c0_i32 = arith.constant 0 : i32
    %c0_i32_0 = arith.constant 0 : i32
    %c0_i32_1 = arith.constant 0 : i32
    return %c0_i32, %c0_i32_0 : i32, i32
  }
  func.func @transform_11(%arg0: i32) -> (i32, i32) {
    %c0_i32 = arith.constant 0 : i32
    %c0_i32_0 = arith.constant 0 : i32
    %c0_i32_1 = arith.constant 0 : i32
    return %c0_i32, %c0_i32_0 : i32, i32
  }
  func.func @transform_12(%arg0: i32) -> (i32, i32) {
    %c0_i32 = arith.constant 0 : i32
    %c0_i32_0 = arith.constant 0 : i32
    %c0_i32_1 = arith.constant 0 : i32
    return %c0_i32, %c0_i32_0 : i32, i32
  }
  func.func @transform_13(%arg0: i32) -> (i32, i32) {
    %c0_i32 = arith.constant 0 : i32
    %c0_i32_0 = arith.constant 0 : i32
    %c0_i32_1 = arith.constant 0 : i32
    return %c0_i32, %c0_i32_0 : i32, i32
  }
  func.func @transform_14(%arg0: i32) -> (i32, i32, i32) {
    %c0_i32 = arith.constant 0 : i32
    %c0_i32_0 = arith.constant 0 : i32
    %c0_i32_1 = arith.constant 0 : i32
    return %arg0, %c0_i32, %c0_i32_0 : i32, i32, i32
  }
}

</mosaic_0001>

<llo_original>
// kernel: tpu_custom_call.1
$region0: #{tpu_custom_call.1}
  #allocation0 [shape = 'u32[]', space=smem, size = 0x4, offset = 0x4, fixed_abs, tag = 'smem constant byte address 0x4 - core index']
  #allocation1 [shape = 'u32[144,128]{1,0:T(1,128)}', space=vmem, size = 0x12000, scoped, tag = 'internal scratch']
  %s0 = inlined_call_operand.hbm [shape: f32[1,4,256], index: 0, kind: input, shape index: {}]
  %s1 = inlined_call_operand.hbm [shape: f32[8,4], index: 1, kind: input, shape index: {}]
  %s2 = inlined_call_operand.hbm [shape: f32[8,1], index: 2, kind: input, shape index: {}]
  %s3 = inlined_call_operand.hbm [shape: f32[8,4], index: 3, kind: input, shape index: {}]
  %s4 = inlined_call_operand.hbm [shape: f32[8,1], index: 4, kind: input, shape index: {}]
  %s5 = inlined_call_operand.hbm [shape: f32[3,8,8], index: 5, kind: input, shape index: {}]
  %s6 = inlined_call_operand.hbm [shape: f32[8,1], index: 6, kind: input, shape index: {}]
  %s7 = inlined_call_operand.hbm [shape: f32[8,4], index: 7, kind: input, shape index: {}]
  %s8 = inlined_call_operand.hbm [shape: f32[8,1], index: 8, kind: input, shape index: {}]
  %s9 = inlined_call_operand.hbm [shape: f32[5,8,8], index: 9, kind: input, shape index: {}]
  %s10 = inlined_call_operand.hbm [shape: f32[8,1], index: 10, kind: input, shape index: {}]
  %s11 = inlined_call_operand.hbm [shape: f32[8,4], index: 11, kind: input, shape index: {}]
  %s12 = inlined_call_operand.hbm [shape: f32[8,1], index: 12, kind: input, shape index: {}]
  %s13 = inlined_call_operand.hbm [shape: f32[256,8], index: 13, kind: input, shape index: {}]
  %s14 = inlined_call_operand.hbm [shape: f32[1,32,8], index: 14, kind: output, shape index: {}]
  %s15 = sld [smem:[#allocation0]]
  $region122: #{tpu_custom_call.1} parent=0
    _
  %s17 = ssub.s32 1, %s15
  %s18 = scalar_select 0, %s17, %s15
  $region1: #{tpu_custom_call.1} parent=0
    #allocation2 [shape = 'u8[4096]{0}', space=vmem, size = 0x1000, scoped, tag = 'input window, operand 0, single buffered']
    #allocation3 [shape = 's32[1]{0}', space=sflag, size = 0x4, scoped, tag = 'scoped memory for tpu_custom_call.1']
    #allocation4 [shape = 's32[1]{0}', space=sflag, size = 0x4, scoped, tag = 'scoped memory for tpu_custom_call.1']
    #allocation5 [shape = 'u8[4096]{0}', space=vmem, size = 0x1000, scoped, tag = 'input window, operand 1, single buffered']
    #allocation6 [shape = 's32[1]{0}', space=sflag, size = 0x4, scoped, tag = 'scoped memory for tpu_custom_call.1']
    #allocation7 [shape = 'u8[4096]{0}', space=vmem, size = 0x1000, scoped, tag = 'input window, operand 2, single buffered']
    #allocation8 [shape = 'u8[4096]{0}', space=vmem, size = 0x1000, scoped, tag = 'input window, operand 3, single buffered']
    #allocation9 [shape = 's32[1]{0}', space=sflag, size = 0x4, scoped, tag = 'scoped memory for tpu_custom_call.1']
    #allocation10 [shape = 'u8[4096]{0}', space=vmem, size = 0x1000, scoped, tag = 'input window, operand 4, single buffered']
    #allocation11 [shape = 'u8[12288]{0}', space=vmem, size = 0x3000, scoped, tag = 'input window, operand 5, single buffered']
    #allocation12 [shape = 's32[1]{0}', space=sflag, size = 0x4, scoped, tag = 'scoped memory for tpu_custom_call.1']
    #allocation13 [shape = 'u8[4096]{0}', space=vmem, size = 0x1000, scoped, tag = 'input window, operand 6, single buffered']
    #allocation14 [shape = 'u8[4096]{0}', space=vmem, size = 0x1000, scoped, tag = 'input window, operand 7, single buffered']
    #allocation15 [shape = 's32[1]{0}', space=sflag, size = 0x4, scoped, tag = 'scoped memory for tpu_custom_call.1']
    #allocation16 [shape = 'u8[4096]{0}', space=vmem, size = 0x1000, scoped, tag = 'input window, operand 8, single buffered']
    #allocation17 [shape = 'u8[20480]{0}', space=vmem, size = 0x5000, scoped, tag = 'input window, operand 9, single buffered']
    #allocation18 [shape = 's32[1]{0}', space=sflag, size = 0x4, scoped, tag = 'scoped memory for tpu_custom_call.1']
    #allocation19 [shape = 'u8[4096]{0}', space=vmem, size = 0x1000, scoped, tag = 'input window, operand 10, single buffered']
    #allocation20 [shape = 'u8[4096]{0}', space=vmem, size = 0x1000, scoped, tag = 'input window, operand 11, single buffered']
    #allocation21 [shape = 's32[1]{0}', space=sflag, size = 0x4, scoped, tag = 'scoped memory for tpu_custom_call.1']
    #allocation22 [shape = 'u8[4096]{0}', space=vmem, size = 0x1000, scoped, tag = 'input window, operand 12, single buffered']
    #allocation23 [shape = 'u8[131072]{0}', space=vmem, size = 0x20000, scoped, tag = 'input window, operand 13, single buffered']
    #allocation24 [shape = 's32[1]{0}', space=sflag, size = 0x4, scoped, tag = 'scoped memory for tpu_custom_call.1']
    #allocation25 [shape = 'u8[16384]{0}', space=vmem, size = 0x4000, scoped, tag = 'output window, operand 0, single buffered']
    %19 = vsyncpa [#allocation3], 0
    %20 = vsyncpa [#allocation6], 0
    %21 = vsyncpa [#allocation9], 0
    %22 = vsyncpa [#allocation12], 0
    %23 = vsyncpa [#allocation15], 0
    %24 = vsyncpa [#allocation18], 0
    %25 = vsyncpa [#allocation21], 0
    %26 = vsyncpa [#allocation24], 0
    %27 = vsyncpa [#allocation4], 0
    // Predicated region
    $region2: #{tpu_custom_call.1} parent=1 // pred_check
      _
    $region3: #{tpu_custom_call.1} parent=1 // pred_check_branch
      %29 = sbr.rel (0) target = $region5
    $region4: #{tpu_custom_call.1} parent=1 // pred_region
      %s31 = ssub.s32 128, 128
      %32 = vsyncadd [#allocation3], %s31
      %s34 = sshll.u32 [#allocation2], 4
      %s35 = int_to_ptr.vmem [resolvable:$true] %s34
      %37 = dma.hbm_to_vmem [thread:$0]  %s0, 128, %s35, [#allocation3]
    $region5: #{tpu_custom_call.1} parent=1 // pred_fallthru
      _
    // Predicated region
    $region6: #{tpu_custom_call.1} parent=1 // pred_check
      _
    $region7: #{tpu_custom_call.1} parent=1 // pred_check_branch
      %39 = sbr.rel (0) target = $region9
    $region8: #{tpu_custom_call.1} parent=1 // pred_region
      %s41 = ssub.s32 128, 128
      %42 = vsyncadd [#allocation6], %s41
      %s44 = sshll.u32 [#allocation5], 4
      %s45 = int_to_ptr.vmem [resolvable:$true] %s44
      %47 = dma.hbm_to_vmem [thread:$0]  %s1, 128, %s45, [#allocation6]
    $region9: #{tpu_custom_call.1} parent=1 // pred_fallthru
      _
    // Predicated region
    $region10: #{tpu_custom_call.1} parent=1 // pred_check
      _
    $region11: #{tpu_custom_call.1} parent=1 // pred_check_branch
      %49 = sbr.rel (0) target = $region13
    $region12: #{tpu_custom_call.1} parent=1 // pred_region
      %s51 = ssub.s32 128, 128
      %52 = vsyncadd [#allocation6], %s51
      %s54 = sshll.u32 [#allocation7], 4
      %s55 = int_to_ptr.vmem [resolvable:$true] %s54
      %57 = dma.hbm_to_vmem [thread:$0]  %s2, 128, %s55, [#allocation6]
    $region13: #{tpu_custom_call.1} parent=1 // pred_fallthru
      _
    // Predicated region
    $region14: #{tpu_custom_call.1} parent=1 // pred_check
      _
    $region15: #{tpu_custom_call.1} parent=1 // pred_check_branch
      %59 = sbr.rel (0) target = $region17
    $region16: #{tpu_custom_call.1} parent=1 // pred_region
      %s61 = ssub.s32 128, 128
      %62 = vsyncadd [#allocation9], %s61
      %s64 = sshll.u32 [#allocation8], 4
      %s65 = int_to_ptr.vmem [resolvable:$true] %s64
      %67 = dma.hbm_to_vmem [thread:$0]  %s3, 128, %s65, [#allocation9]
    $region17: #{tpu_custom_call.1} parent=1 // pred_fallthru
      _
    // Predicated region
    $region18: #{tpu_custom_call.1} parent=1 // pred_check
      _
    $region19: #{tpu_custom_call.1} parent=1 // pred_check_branch
      %69 = sbr.rel (0) target = $region21
    $region20: #{tpu_custom_call.1} parent=1 // pred_region
      %s71 = ssub.s32 128, 128
      %72 = vsyncadd [#allocation9], %s71
      %s74 = sshll.u32 [#allocation10], 4
      %s75 = int_to_ptr.vmem [resolvable:$true] %s74
      %77 = dma.hbm_to_vmem [thread:$0]  %s4, 128, %s75, [#allocation9]
    $region21: #{tpu_custom_call.1} parent=1 // pred_fallthru
      _
    // Predicated region
    $region22: #{tpu_custom_call.1} parent=1 // pred_check
      _
    $region23: #{tpu_custom_call.1} parent=1 // pred_check_branch
      %79 = sbr.rel (0) target = $region25
    $region24: #{tpu_custom_call.1} parent=1 // pred_region
      %s81 = ssub.s32 384, 384
      %82 = vsyncadd [#allocation12], %s81
      %s83 = sshll.u32 [#allocation11], 4
      %s84 = int_to_ptr.vmem [resolvable:$true] %s83
      %89 = dma.hbm_to_vmem [thread:$0]  %s5, 384, %s84, [#allocation12], 128, 128, 8
    $region25: #{tpu_custom_call.1} parent=1 // pred_fallthru
      _
    // Predicated region
    $region26: #{tpu_custom_call.1} parent=1 // pred_check
      _
    $region27: #{tpu_custom_call.1} parent=1 // pred_check_branch
      %91 = sbr.rel (0) target = $region29
    $region28: #{tpu_custom_call.1} parent=1 // pred_region
      %s93 = ssub.s32 128, 128
      %94 = vsyncadd [#allocation12], %s93
      %s96 = sshll.u32 [#allocation13], 4
      %s97 = int_to_ptr.vmem [resolvable:$true] %s96
      %99 = dma.hbm_to_vmem [thread:$0]  %s6, 128, %s97, [#allocation12]
    $region29: #{tpu_custom_call.1} parent=1 // pred_fallthru
      _
    // Predicated region
    $region30: #{tpu_custom_call.1} parent=1 // pred_check
      _
    $region31: #{tpu_custom_call.1} parent=1 // pred_check_branch
      %101 = sbr.rel (0) target = $region33
    $region32: #{tpu_custom_call.1} parent=1 // pred_region
      %s103 = ssub.s32 128, 128
      %104 = vsyncadd [#allocation15], %s103
      %s106 = sshll.u32 [#allocation14], 4
      %s107 = int_to_ptr.vmem [resolvable:$true] %s106
      %109 = dma.hbm_to_vmem [thread:$0]  %s7, 128, %s107, [#allocation15]
    $region33: #{tpu_custom_call.1} parent=1 // pred_fallthru
      _
    // Predicated region
    $region34: #{tpu_custom_call.1} parent=1 // pred_check
      _
    $region35: #{tpu_custom_call.1} parent=1 // pred_check_branch
      %111 = sbr.rel (0) target = $region37
    $region36: #{tpu_custom_call.1} parent=1 // pred_region
      %s113 = ssub.s32 128, 128
      %114 = vsyncadd [#allocation15], %s113
      %s116 = sshll.u32 [#allocation16], 4
      %s117 = int_to_ptr.vmem [resolvable:$true] %s116
      %119 = dma.hbm_to_vmem [thread:$0]  %s8, 128, %s117, [#allocation15]
    $region37: #{tpu_custom_call.1} parent=1 // pred_fallthru
      _
    // Predicated region
    $region38: #{tpu_custom_call.1} parent=1 // pred_check
      _
    $region39: #{tpu_custom_call.1} parent=1 // pred_check_branch
      %121 = sbr.rel (0) target = $region41
    $region40: #{tpu_custom_call.1} parent=1 // pred_region
      %s123 = ssub.s32 640, 640
      %124 = vsyncadd [#allocation18], %s123
      %s125 = sshll.u32 [#allocation17], 4
      %s126 = int_to_ptr.vmem [resolvable:$true] %s125
      %131 = dma.hbm_to_vmem [thread:$0]  %s9, 640, %s126, [#allocation18], 128, 128, 8
    $region41: #{tpu_custom_call.1} parent=1 // pred_fallthru
      _
    // Predicated region
    $region42: #{tpu_custom_call.1} parent=1 // pred_check
      _
    $region43: #{tpu_custom_call.1} parent=1 // pred_check_branch
      %133 = sbr.rel (0) target = $region45
    $region44: #{tpu_custom_call.1} parent=1 // pred_region
      %s135 = ssub.s32 128, 128
      %136 = vsyncadd [#allocation18], %s135
      %s138 = sshll.u32 [#allocation19], 4
      %s139 = int_to_ptr.vmem [resolvable:$true] %s138
      %141 = dma.hbm_to_vmem [thread:$0]  %s10, 128, %s139, [#allocation18]
    $region45: #{tpu_custom_call.1} parent=1 // pred_fallthru
      _
    // Predicated region
    $region46: #{tpu_custom_call.1} parent=1 // pred_check
      _
    $region47: #{tpu_custom_call.1} parent=1 // pred_check_branch
      %143 = sbr.rel (0) target = $region49
    $region48: #{tpu_custom_call.1} parent=1 // pred_region
      %s145 = ssub.s32 128, 128
      %146 = vsyncadd [#allocation21], %s145
      %s148 = sshll.u32 [#allocation20], 4
      %s149 = int_to_ptr.vmem [resolvable:$true] %s148
      %151 = dma.hbm_to_vmem [thread:$0]  %s11, 128, %s149, [#allocation21]
    $region49: #{tpu_custom_call.1} parent=1 // pred_fallthru
      _
    // Predicated region
    $region50: #{tpu_custom_call.1} parent=1 // pred_check
      _
    $region51: #{tpu_custom_call.1} parent=1 // pred_check_branch
      %153 = sbr.rel (0) target = $region53
    $region52: #{tpu_custom_call.1} parent=1 // pred_region
      %s155 = ssub.s32 128, 128
      %156 = vsyncadd [#allocation21], %s155
      %s158 = sshll.u32 [#allocation22], 4
      %s159 = int_to_ptr.vmem [resolvable:$true] %s158
      %161 = dma.hbm_to_vmem [thread:$0]  %s12, 128, %s159, [#allocation21]
    $region53: #{tpu_custom_call.1} parent=1 // pred_fallthru
      _
    // Predicated region
    $region54: #{tpu_custom_call.1} parent=1 // pred_check
      _
    $region55: #{tpu_custom_call.1} parent=1 // pred_check_branch
      %163 = sbr.rel (0) target = $region57
    $region56: #{tpu_custom_call.1} parent=1 // pred_region
      %s165 = ssub.s32 4096, 4096
      %166 = vsyncadd [#allocation24], %s165
      %s167 = sshll.u32 [#allocation23], 4
      %s168 = int_to_ptr.vmem [resolvable:$true] %s167
      %173 = dma.hbm_to_vmem [thread:$0]  %s13, 4096, %s168, [#allocation24], 128, 128, 8
    $region57: #{tpu_custom_call.1} parent=1 // pred_fallthru
      _
    // Predicated region
    $region58: #{tpu_custom_call.1} parent=1 // pred_check
      _
    $region59: #{tpu_custom_call.1} parent=1 // pred_check_branch
      %175 = sbr.rel (0) target = $region61
    $region60: #{tpu_custom_call.1} parent=1 // pred_region
      %176 = dma.done [#allocation3], 128
    $region61: #{tpu_custom_call.1} parent=1 // pred_fallthru
      _
    // Predicated region
    $region62: #{tpu_custom_call.1} parent=1 // pred_check
      _
    $region63: #{tpu_custom_call.1} parent=1 // pred_check_branch
      %178 = sbr.rel (0) target = $region65
    $region64: #{tpu_custom_call.1} parent=1 // pred_region
      %179 = dma.done [#allocation6], 128
    $region65: #{tpu_custom_call.1} parent=1 // pred_fallthru
      _
    // Predicated region
    $region66: #{tpu_custom_call.1} parent=1 // pred_check
      _
    $region67: #{tpu_custom_call.1} parent=1 // pred_check_branch
      %181 = sbr.rel (0) target = $region69
    $region68: #{tpu_custom_call.1} parent=1 // pred_region
      %182 = dma.done [#allocation6], 128
    $region69: #{tpu_custom_call.1} parent=1 // pred_fallthru
      _
    // Predicated region
    $region70: #{tpu_custom_call.1} parent=1 // pred_check
      _
    $region71: #{tpu_custom_call.1} parent=1 // pred_check_branch
      %184 = sbr.rel (0) target = $region73
    $region72: #{tpu_custom_call.1} parent=1 // pred_region
      %185 = dma.done [#allocation9], 128
    $region73: #{tpu_custom_call.1} parent=1 // pred_fallthru
      _
    // Predicated region
    $region74: #{tpu_custom_call.1} parent=1 // pred_check
      _
    $region75: #{tpu_custom_call.1} parent=1 // pred_check_branch
      %187 = sbr.rel (0) target = $region77
    $region76: #{tpu_custom_call.1} parent=1 // pred_region
      %188 = dma.done [#allocation9], 128
    $region77: #{tpu_custom_call.1} parent=1 // pred_fallthru
      _
    // Predicated region
    $region78: #{tpu_custom_call.1} parent=1 // pred_check
      _
    $region79: #{tpu_custom_call.1} parent=1 // pred_check_branch
      %190 = sbr.rel (0) target = $region81
    $region80: #{tpu_custom_call.1} parent=1 // pred_region
      %191 = dma.done [#allocation12], 384
    $region81: #{tpu_custom_call.1} parent=1 // pred_fallthru
      _
    // Predicated region
    $region82: #{tpu_custom_call.1} parent=1 // pred_check
      _
    $region83: #{tpu_custom_call.1} parent=1 // pred_check_branch
      %193 = sbr.rel (0) target = $region85
    $region84: #{tpu_custom_call.1} parent=1 // pred_region
      %194 = dma.done [#allocation12], 128
    $region85: #{tpu_custom_call.1} parent=1 // pred_fallthru
      _
    // Predicated region
    $region86: #{tpu_custom_call.1} parent=1 // pred_check
      _
    $region87: #{tpu_custom_call.1} parent=1 // pred_check_branch
      %196 = sbr.rel (0) target = $region89
    $region88: #{tpu_custom_call.1} parent=1 // pred_region
      %197 = dma.done [#allocation15], 128
    $region89: #{tpu_custom_call.1} parent=1 // pred_fallthru
      _
    // Predicated region
    $region90: #{tpu_custom_call.1} parent=1 // pred_check
      _
    $region91: #{tpu_custom_call.1} parent=1 // pred_check_branch
      %199 = sbr.rel (0) target = $region93
    $region92: #{tpu_custom_call.1} parent=1 // pred_region
      %200 = dma.done [#allocation15], 128
    $region93: #{tpu_custom_call.1} parent=1 // pred_fallthru
      _
    // Predicated region
    $region94: #{tpu_custom_call.1} parent=1 // pred_check
      _
    $region95: #{tpu_custom_call.1} parent=1 // pred_check_branch
      %202 = sbr.rel (0) target = $region97
    $region96: #{tpu_custom_call.1} parent=1 // pred_region
      %203 = dma.done [#allocation18], 640
    $region97: #{tpu_custom_call.1} parent=1 // pred_fallthru
      _
    // Predicated region
    $region98: #{tpu_custom_call.1} parent=1 // pred_check
      _
    $region99: #{tpu_custom_call.1} parent=1 // pred_check_branch
      %205 = sbr.rel (0) target = $region101
    $region100: #{tpu_custom_call.1} parent=1 // pred_region
      %206 = dma.done [#allocation18], 128
    $region101: #{tpu_custom_call.1} parent=1 // pred_fallthru
      _
    // Predicated region
    $region102: #{tpu_custom_call.1} parent=1 // pred_check
      _
    $region103: #{tpu_custom_call.1} parent=1 // pred_check_branch
      %208 = sbr.rel (0) target = $region105
    $region104: #{tpu_custom_call.1} parent=1 // pred_region
      %209 = dma.done [#allocation21], 128
    $region105: #{tpu_custom_call.1} parent=1 // pred_fallthru
      _
    // Predicated region
    $region106: #{tpu_custom_call.1} parent=1 // pred_check
      _
    $region107: #{tpu_custom_call.1} parent=1 // pred_check_branch
      %211 = sbr.rel (0) target = $region109
    $region108: #{tpu_custom_call.1} parent=1 // pred_region
      %212 = dma.done [#allocation21], 128
    $region109: #{tpu_custom_call.1} parent=1 // pred_fallthru
      _
    // Predicated region
    $region110: #{tpu_custom_call.1} parent=1 // pred_check
      _
    $region111: #{tpu_custom_call.1} parent=1 // pred_check_branch
      %214 = sbr.rel (0) target = $region113
    $region112: #{tpu_custom_call.1} parent=1 // pred_region
      %215 = dma.done [#allocation24], 4096
    $region113: #{tpu_custom_call.1} parent=1 // pred_fallthru
      _
    %v216 = vld [vmem:[#allocation2] sm:$0xff]
    %v217 = vlaneseq
    %v218 = vand.u32 %v217, 127
    %v219 = vadd.s32 %v218, 128
    %vm220 = vcmp.lt.s32.totalorder %v218, 0
    %v221 = vsub.s32 0, %v218
    %v222 = vsel %vm220, %v221, %v218
    %v223 = vshrl.u32 %v222, 7
    %v224 = vand.u32 %v222, 127
    %v225 = vsub.s32 0, %v224
    %v226 = vsel %vm220, %v225, %v224
    %vm227 = vcmp.lt.s32.totalorder %v219, 0
    %v228 = vsub.s32 0, %v219
    %v229 = vsel %vm227, %v228, %v219
    %v230 = vshrl.u32 %v229, 7
    %v231 = vand.u32 %v229, 127
    %v232 = vsub.s32 0, %v231
    %v233 = vsel %vm227, %v232, %v231
    %vm234 = vcmp.ne.s32.totalorder %v226, 0
    %vm235 = vcmp.ne.s32.totalorder %v233, 0
    %vm236 = vcmp.lt.s32.totalorder %v226, 0
    %vm237 = vcmp.lt.s32.totalorder %v233, 0
    %vm238 = vmand %vm236, %vm234
    %vm239 = vmand %vm237, %vm235
    %v240 = vadd.s32 %v226, 128
    %v241 = vadd.s32 %v233, 128
    %v242 = vsel %vm238, %v240, %v226
    %v243 = vsel %vm239, %v241, %v233
    %vm244 = vcmp.ge.s32.totalorder %v242, 2
    %vm245 = vcmp.ge.s32.totalorder %v243, 2
    %vm246 = vcmp.ge.s32.totalorder %v242, 1
    %vm247 = vcmp.ge.s32.totalorder %v243, 1
    %vm248 = vcmp.lt.s32.totalorder %v242, 127
    %vm249 = vcmp.lt.s32.totalorder %v243, 127
    %vm250 = vcmp.lt.s32.totalorder %v242, 126
    %vm251 = vcmp.lt.s32.totalorder %v243, 126
    %v252 = vld [vmem:[#allocation5] sm:$0xff]
    %v253 = vld [vmem:[#allocation7] sm:$0xff]
    %255 = vset.pattern.permute.xlu0 0
    %256 = vperm.xlu0 %255, %v253
    %v257 = vpop.permute.xlu0 %256
    %v260 = vcombine.high %v216, %v216
    %vm261 = vcmask 31744
    %v263 = vsel %vm261, %v252, 0
    %vm265 = vcmask 1043456
    %v266 = vsel %vm265, %v216, 0
    %v268 = vsel %vm265, %v260, 0
    %270 = vmatprep.subr.mxu0 %v268
    %271 = vmatpush1.msra.mxu0 %v266
    %272 = vmatprep.subr.mxu0 0.0
    %273 = vmatpush1.msra.mxu0 0.0
    %274 = vmatprep.subr.mxu0 0.0
    %275 = vmatpush1.msra.mxu0 0.0
    %276 = vmatprep.subr.mxu0 0.0
    %277 = vmatpush1.msra.mxu0 0.0
    %278 = vmatprep.subr.mxu0 0.0
    %279 = vmatpush1.msra.mxu0 0.0
    %280 = vmatprep.subr.mxu0 0.0
    %281 = vmatpush1.msra.mxu0 0.0
    %282 = vmatprep.subr.mxu0 0.0
    %283 = vmatpush1.msra.mxu0 0.0
    %284 = vmatprep.subr.mxu0 0.0
    %285 = vmatpush1.msra.mxu0 0.0
    %286 = vmatprep.subr.mxu0 0.0
    %287 = vmatpush1.msra.mxu0 0.0
    %288 = vmatprep.subr.mxu0 0.0
    %289 = vmatpush1.msra.mxu0 0.0
    %290 = vmatprep.subr.mxu0 0.0
    %291 = vmatpush1.msra.mxu0 0.0
    %292 = vmatprep.subr.mxu0 0.0
    %293 = vmatpush1.msra.mxu0 0.0
    %294 = vmatprep.subr.mxu0 0.0
    %295 = vmatpush1.msra.mxu0 0.0
    %296 = vmatprep.subr.mxu0 0.0
    %297 = vmatpush1.msra.mxu0 0.0
    %298 = vmatprep.subr.mxu0 0.0
    %299 = vmatpush1.msra.mxu0 0.0
    %300 = vmatprep.subr.mxu0 0.0
    %301 = vmatpush1.msra.mxu0 0.0
    %302 = vmatprep.subr.mxu0 0.0
    %303 = vmatpush1.msra.mxu0 0.0
    %304 = vmatprep.subr.mxu0 0.0
    %305 = vmatpush1.msra.mxu0 0.0
    %306 = vmatprep.subr.mxu0 0.0
    %307 = vmatpush1.msra.mxu0 0.0
    %308 = vmatprep.subr.mxu0 0.0
    %309 = vmatpush1.msra.mxu0 0.0
    %310 = vmatprep.subr.mxu0 0.0
    %311 = vmatpush1.msra.mxu0 0.0
    %312 = vmatprep.subr.mxu0 0.0
    %313 = vmatpush1.msra.mxu0 0.0
    %314 = vmatprep.subr.mxu0 0.0
    %315 = vmatpush1.msra.mxu0 0.0
    %316 = vmatprep.subr.mxu0 0.0
    %317 = vmatpush1.msra.mxu0 0.0
    %318 = vmatprep.subr.mxu0 0.0
    %319 = vmatpush1.msra.mxu0 0.0
    %320 = vmatprep.subr.mxu0 0.0
    %321 = vmatpush1.msra.mxu0 0.0
    %322 = vmatprep.subr.mxu0 0.0
    %323 = vmatpush1.msra.mxu0 0.0
    %324 = vmatprep.subr.mxu0 0.0
    %325 = vmatpush1.msra.mxu0 0.0
    %326 = vmatprep.subr.mxu0 0.0
    %327 = vmatpush1.msra.mxu0 0.0
    %328 = vmatprep.subr.mxu0 0.0
    %329 = vmatpush1.msra.mxu0 0.0
    %330 = vmatprep.subr.mxu0 0.0
    %331 = vmatpush1.msra.mxu0 0.0
    %332 = vmatprep.subr.mxu0 0.0
    %333 = vmatpush1.msra.mxu0 0.0
    %334 = vmatprep.mubr.f32.mxu0 0.0
    %335 = vmatmul.mubr.f32.gmra.mrb[0].mxu0 %v263
    %v336 = vpop.f32.mrb[0].mxu0
    %v337 = vadd.f32 %v257, %v336
    %v338 = vpop.f32.mrb[0].mxu0
    %v339 = vadd.f32 %v257, %v338
    %340 = vdwg.mxu0
    %v341 = vmax.f32 %v337, 0.0
    %v342 = vmax.f32 %v339, 0.0
    %v343 = vld [vmem:[#allocation8] sm:$0xff]
    %v344 = vld [vmem:[#allocation10] sm:$0xff]
    %346 = vset.pattern.permute.xlu0 0
    %347 = vperm.xlu0 %346, %v344
    %v348 = vpop.permute.xlu0 %347
    %v351 = vsel %vm261, %v343, 0
    %353 = vmatprep.subr.mxu0 %v268
    %354 = vmatpush1.msra.mxu0 %v266
    %355 = vmatprep.subr.mxu0 0.0
    %356 = vmatpush1.msra.mxu0 0.0
    %357 = vmatprep.subr.mxu0 0.0
    %358 = vmatpush1.msra.mxu0 0.0
    %359 = vmatprep.subr.mxu0 0.0
    %360 = vmatpush1.msra.mxu0 0.0
    %361 = vmatprep.subr.mxu0 0.0
    %362 = vmatpush1.msra.mxu0 0.0
    %363 = vmatprep.subr.mxu0 0.0
    %364 = vmatpush1.msra.mxu0 0.0
    %365 = vmatprep.subr.mxu0 0.0
    %366 = vmatpush1.msra.mxu0 0.0
    %367 = vmatprep.subr.mxu0 0.0
    %368 = vmatpush1.msra.mxu0 0.0
    %369 = vmatprep.subr.mxu0 0.0
    %370 = vmatpush1.msra.mxu0 0.0
    %371 = vmatprep.subr.mxu0 0.0
    %372 = vmatpush1.msra.mxu0 0.0
    %373 = vmatprep.subr.mxu0 0.0
    %374 = vmatpush1.msra.mxu0 0.0
    %375 = vmatprep.subr.mxu0 0.0
    %376 = vmatpush1.msra.mxu0 0.0
    %377 = vmatprep.subr.mxu0 0.0
    %378 = vmatpush1.msra.mxu0 0.0
    %379 = vmatprep.subr.mxu0 0.0
    %380 = vmatpush1.msra.mxu0 0.0
    %381 = vmatprep.subr.mxu0 0.0
    %382 = vmatpush1.msra.mxu0 0.0
    %383 = vmatprep.subr.mxu0 0.0
    %384 = vmatpush1.msra.mxu0 0.0
    %385 = vmatprep.subr.mxu0 0.0
    %386 = vmatpush1.msra.mxu0 0.0
    %387 = vmatprep.subr.mxu0 0.0
    %388 = vmatpush1.msra.mxu0 0.0
    %389 = vmatprep.subr.mxu0 0.0
    %390 = vmatpush1.msra.mxu0 0.0
    %391 = vmatprep.subr.mxu0 0.0
    %392 = vmatpush1.msra.mxu0 0.0
    %393 = vmatprep.subr.mxu0 0.0
    %394 = vmatpush1.msra.mxu0 0.0
    %395 = vmatprep.subr.mxu0 0.0
    %396 = vmatpush1.msra.mxu0 0.0
    %397 = vmatprep.subr.mxu0 0.0
    %398 = vmatpush1.msra.mxu0 0.0
    %399 = vmatprep.subr.mxu0 0.0
    %400 = vmatpush1.msra.mxu0 0.0
    %401 = vmatprep.subr.mxu0 0.0
    %402 = vmatpush1.msra.mxu0 0.0
    %403 = vmatprep.subr.mxu0 0.0
    %404 = vmatpush1.msra.mxu0 0.0
    %405 = vmatprep.subr.mxu0 0.0
    %406 = vmatpush1.msra.mxu0 0.0
    %407 = vmatprep.subr.mxu0 0.0
    %408 = vmatpush1.msra.mxu0 0.0
    %409 = vmatprep.subr.mxu0 0.0
    %410 = vmatpush1.msra.mxu0 0.0
    %411 = vmatprep.subr.mxu0 0.0
    %412 = vmatpush1.msra.mxu0 0.0
    %413 = vmatprep.subr.mxu0 0.0
    %414 = vmatpush1.msra.mxu0 0.0
    %415 = vmatprep.subr.mxu0 0.0
    %416 = vmatpush1.msra.mxu0 0.0
    %417 = vmatprep.mubr.f32.mxu0 0.0
    %418 = vmatmul.mubr.f32.gmra.mrb[0].mxu0 %v351
    %v419 = vpop.f32.mrb[0].mxu0
    %v420 = vadd.f32 %v348, %v419
    %v421 = vpop.f32.mrb[0].mxu0
    %v422 = vadd.f32 %v348, %v421
    %423 = vdwg.mxu0
    %v424 = vmax.f32 %v420, 0.0
    %v425 = vmax.f32 %v422, 0.0
    %v426 = vld [vmem:[#allocation11] sm:$0xff]
    %429 = vrot.lane.b32.xlu0 %v424, 1
    %v430 = vpop.permute.xlu0 %429
    %431 = vrot.lane.b32.xlu0 %v425, 1
    %v432 = vpop.permute.xlu0 %431
    %vm433 = vcmask 7168
    %v434 = vsel %vm433, %v430, %v432
    %v437 = vsel %vm433, 0.0, %v430
    %v438 = vsel %vm246, 1, 0
    %v439 = vsel %vm247, 1, 0
    %vm440 = vcmp.eq.s32.totalorder %v438, 1
    %vm441 = vcmp.eq.s32.totalorder %v439, 1
    %v442 = vsel %vm440, %v437, 0.0
    %v443 = vsel %vm441, %v434, 0.0
    %s444 = scalar_lea.vmem [#allocation11], 8
    %v445 = vld [vmem:[%s444] sm:$0xff]
    %vm446 = vcmask 64512
    %v448 = vsel %vm446, %v445, 0
    %450 = vmatprep.subr.mxu0 %v425
    %451 = vmatpush1.msra.mxu0 %v424
    %452 = vmatprep.subr.mxu0 0.0
    %453 = vmatpush1.msra.mxu0 0.0
    %454 = vmatprep.subr.mxu0 0.0
    %455 = vmatpush1.msra.mxu0 0.0
    %456 = vmatprep.subr.mxu0 0.0
    %457 = vmatpush1.msra.mxu0 0.0
    %458 = vmatprep.subr.mxu0 0.0
    %459 = vmatpush1.msra.mxu0 0.0
    %460 = vmatprep.subr.mxu0 0.0
    %461 = vmatpush1.msra.mxu0 0.0
    %462 = vmatprep.subr.mxu0 0.0
    %463 = vmatpush1.msra.mxu0 0.0
    %464 = vmatprep.subr.mxu0 0.0
    %465 = vmatpush1.msra.mxu0 0.0
    %466 = vmatprep.subr.mxu0 0.0
    %467 = vmatpush1.msra.mxu0 0.0
    %468 = vmatprep.subr.mxu0 0.0
    %469 = vmatpush1.msra.mxu0 0.0
    %470 = vmatprep.subr.mxu0 0.0
    %471 = vmatpush1.msra.mxu0 0.0
    %472 = vmatprep.subr.mxu0 0.0
    %473 = vmatpush1.msra.mxu0 0.0
    %474 = vmatprep.subr.mxu0 0.0
    %475 = vmatpush1.msra.mxu0 0.0
    %476 = vmatprep.subr.mxu0 0.0
    %477 = vmatpush1.msra.mxu0 0.0
    %478 = vmatprep.subr.mxu0 0.0
    %479 = vmatpush1.msra.mxu0 0.0
    %480 = vmatprep.subr.mxu0 0.0
    %481 = vmatpush1.msra.mxu0 0.0
    %482 = vmatprep.subr.mxu0 0.0
    %483 = vmatpush1.msra.mxu0 0.0
    %484 = vmatprep.subr.mxu0 0.0
    %485 = vmatpush1.msra.mxu0 0.0
    %486 = vmatprep.subr.mxu0 0.0
    %487 = vmatpush1.msra.mxu0 0.0
    %488 = vmatprep.subr.mxu0 0.0
    %489 = vmatpush1.msra.mxu0 0.0
    %490 = vmatprep.subr.mxu0 0.0
    %491 = vmatpush1.msra.mxu0 0.0
    %492 = vmatprep.subr.mxu0 0.0
    %493 = vmatpush1.msra.mxu0 0.0
    %494 = vmatprep.subr.mxu0 0.0
    %495 = vmatpush1.msra.mxu0 0.0
    %496 = vmatprep.subr.mxu0 0.0
    %497 = vmatpush1.msra.mxu0 0.0
    %498 = vmatprep.subr.mxu0 0.0
    %499 = vmatpush1.msra.mxu0 0.0
    %500 = vmatprep.subr.mxu0 0.0
    %501 = vmatpush1.msra.mxu0 0.0
    %502 = vmatprep.subr.mxu0 0.0
    %503 = vmatpush1.msra.mxu0 0.0
    %504 = vmatprep.subr.mxu0 0.0
    %505 = vmatpush1.msra.mxu0 0.0
    %506 = vmatprep.subr.mxu0 0.0
    %507 = vmatpush1.msra.mxu0 0.0
    %508 = vmatprep.subr.mxu0 0.0
    %509 = vmatpush1.msra.mxu0 0.0
    %510 = vmatprep.subr.mxu0 0.0
    %511 = vmatpush1.msra.mxu0 0.0
    %512 = vmatprep.subr.mxu0 0.0
    %513 = vmatpush1.msra.mxu0 0.0
    %514 = vmatprep.mubr.f32.mxu0 0.0
    %515 = vmatmul.mubr.f32.gmra.mrb[0].mxu0 %v448
    %v516 = vpop.f32.mrb[0].mxu0
    %v517 = vadd.f32 0.0, %v516
    %v518 = vpop.f32.mrb[0].mxu0
    %v519 = vadd.f32 0.0, %v518
    %520 = vdwg.mxu0
    %v522 = vsel %vm446, %v426, 0
    %524 = vmatprep.subr.mxu0 %v443
    %525 = vmatpush1.msra.mxu0 %v442
    %526 = vmatprep.subr.mxu0 0.0
    %527 = vmatpush1.msra.mxu0 0.0
    %528 = vmatprep.subr.mxu0 0.0
    %529 = vmatpush1.msra.mxu0 0.0
    %530 = vmatprep.subr.mxu0 0.0
    %531 = vmatpush1.msra.mxu0 0.0
    %532 = vmatprep.subr.mxu0 0.0
    %533 = vmatpush1.msra.mxu0 0.0
    %534 = vmatprep.subr.mxu0 0.0
    %535 = vmatpush1.msra.mxu0 0.0
    %536 = vmatprep.subr.mxu0 0.0
    %537 = vmatpush1.msra.mxu0 0.0
    %538 = vmatprep.subr.mxu0 0.0
    %539 = vmatpush1.msra.mxu0 0.0
    %540 = vmatprep.subr.mxu0 0.0
    %541 = vmatpush1.msra.mxu0 0.0
    %542 = vmatprep.subr.mxu0 0.0
    %543 = vmatpush1.msra.mxu0 0.0
    %544 = vmatprep.subr.mxu0 0.0
    %545 = vmatpush1.msra.mxu0 0.0
    %546 = vmatprep.subr.mxu0 0.0
    %547 = vmatpush1.msra.mxu0 0.0
    %548 = vmatprep.subr.mxu0 0.0
    %549 = vmatpush1.msra.mxu0 0.0
    %550 = vmatprep.subr.mxu0 0.0
    %551 = vmatpush1.msra.mxu0 0.0
    %552 = vmatprep.subr.mxu0 0.0
    %553 = vmatpush1.msra.mxu0 0.0
    %554 = vmatprep.subr.mxu0 0.0
    %555 = vmatpush1.msra.mxu0 0.0
    %556 = vmatprep.subr.mxu0 0.0
    %557 = vmatpush1.msra.mxu0 0.0
    %558 = vmatprep.subr.mxu0 0.0
    %559 = vmatpush1.msra.mxu0 0.0
    %560 = vmatprep.subr.mxu0 0.0
    %561 = vmatpush1.msra.mxu0 0.0
    %562 = vmatprep.subr.mxu0 0.0
    %563 = vmatpush1.msra.mxu0 0.0
    %564 = vmatprep.subr.mxu0 0.0
    %565 = vmatpush1.msra.mxu0 0.0
    %566 = vmatprep.subr.mxu0 0.0
    %567 = vmatpush1.msra.mxu0 0.0
    %568 = vmatprep.subr.mxu0 0.0
    %569 = vmatpush1.msra.mxu0 0.0
    %570 = vmatprep.subr.mxu0 0.0
    %571 = vmatpush1.msra.mxu0 0.0
    %572 = vmatprep.subr.mxu0 0.0
    %573 = vmatpush1.msra.mxu0 0.0
    %574 = vmatprep.subr.mxu0 0.0
    %575 = vmatpush1.msra.mxu0 0.0
    %576 = vmatprep.subr.mxu0 0.0
    %577 = vmatpush1.msra.mxu0 0.0
    %578 = vmatprep.subr.mxu0 0.0
    %579 = vmatpush1.msra.mxu0 0.0
    %580 = vmatprep.subr.mxu0 0.0
    %581 = vmatpush1.msra.mxu0 0.0
    %582 = vmatprep.subr.mxu0 0.0
    %583 = vmatpush1.msra.mxu0 0.0
    %584 = vmatprep.subr.mxu0 0.0
    %585 = vmatpush1.msra.mxu0 0.0
    %586 = vmatprep.subr.mxu0 0.0
    %587 = vmatpush1.msra.mxu0 0.0
    %588 = vmatprep.mubr.f32.mxu0 0.0
    %589 = vmatmul.mubr.f32.gmra.mrb[0].mxu0 %v522
    %v590 = vpop.f32.mrb[0].mxu0
    %v591 = vadd.f32 %v517, %v590
    %v592 = vpop.f32.mrb[0].mxu0
    %v593 = vadd.f32 %v519, %v592
    %594 = vdwg.mxu0
    %s595 = scalar_lea.vmem [#allocation11], 16
    %v596 = vld [vmem:[%s595] sm:$0xff]
    %597 = vrot.lane.b32.xlu0 %v424, 127
    %v598 = vpop.permute.xlu0 %597
    %599 = vrot.lane.b32.xlu0 %v425, 127
    %v600 = vpop.permute.xlu0 %599
    %vm601 = vcmask 1039360
    %v602 = vsel %vm601, %v598, %v600
    %v605 = vsel %vm601, %v600, 0.0
    %v606 = vsel %vm248, 1, 0
    %v607 = vsel %vm249, 1, 0
    %vm608 = vcmp.eq.s32.totalorder %v606, 1
    %vm609 = vcmp.eq.s32.totalorder %v607, 1
    %v610 = vsel %vm608, %v602, 0.0
    %v611 = vsel %vm609, %v605, 0.0
    %v613 = vsel %vm446, %v596, 0
    %615 = vmatprep.subr.mxu0 %v611
    %616 = vmatpush1.msra.mxu0 %v610
    %617 = vmatprep.subr.mxu0 0.0
    %618 = vmatpush1.msra.mxu0 0.0
    %619 = vmatprep.subr.mxu0 0.0
    %620 = vmatpush1.msra.mxu0 0.0
    %621 = vmatprep.subr.mxu0 0.0
    %622 = vmatpush1.msra.mxu0 0.0
    %623 = vmatprep.subr.mxu0 0.0
    %624 = vmatpush1.msra.mxu0 0.0
    %625 = vmatprep.subr.mxu0 0.0
    %626 = vmatpush1.msra.mxu0 0.0
    %627 = vmatprep.subr.mxu0 0.0
    %628 = vmatpush1.msra.mxu0 0.0
    %629 = vmatprep.subr.mxu0 0.0
    %630 = vmatpush1.msra.mxu0 0.0
    %631 = vmatprep.subr.mxu0 0.0
    %632 = vmatpush1.msra.mxu0 0.0
    %633 = vmatprep.subr.mxu0 0.0
    %634 = vmatpush1.msra.mxu0 0.0
    %635 = vmatprep.subr.mxu0 0.0
    %636 = vmatpush1.msra.mxu0 0.0
    %637 = vmatprep.subr.mxu0 0.0
    %638 = vmatpush1.msra.mxu0 0.0
    %639 = vmatprep.subr.mxu0 0.0
    %640 = vmatpush1.msra.mxu0 0.0
    %641 = vmatprep.subr.mxu0 0.0
    %642 = vmatpush1.msra.mxu0 0.0
    %643 = vmatprep.subr.mxu0 0.0
    %644 = vmatpush1.msra.mxu0 0.0
    %645 = vmatprep.subr.mxu0 0.0
    %646 = vmatpush1.msra.mxu0 0.0
    %647 = vmatprep.subr.mxu0 0.0
    %648 = vmatpush1.msra.mxu0 0.0
    %649 = vmatprep.subr.mxu0 0.0
    %650 = vmatpush1.msra.mxu0 0.0
    %651 = vmatprep.subr.mxu0 0.0
    %652 = vmatpush1.msra.mxu0 0.0
    %653 = vmatprep.subr.mxu0 0.0
    %654 = vmatpush1.msra.mxu0 0.0
    %655 = vmatprep.subr.mxu0 0.0
    %656 = vmatpush1.msra.mxu0 0.0
    %657 = vmatprep.subr.mxu0 0.0
    %658 = vmatpush1.msra.mxu0 0.0
    %659 = vmatprep.subr.mxu0 0.0
    %660 = vmatpush1.msra.mxu0 0.0
    %661 = vmatprep.subr.mxu0 0.0
    %662 = vmatpush1.msra.mxu0 0.0
    %663 = vmatprep.subr.mxu0 0.0
    %664 = vmatpush1.msra.mxu0 0.0
    %665 = vmatprep.subr.mxu0 0.0
    %666 = vmatpush1.msra.mxu0 0.0
    %667 = vmatprep.subr.mxu0 0.0
    %668 = vmatpush1.msra.mxu0 0.0
    %669 = vmatprep.subr.mxu0 0.0
    %670 = vmatpush1.msra.mxu0 0.0
    %671 = vmatprep.subr.mxu0 0.0
    %672 = vmatpush1.msra.mxu0 0.0
    %673 = vmatprep.subr.mxu0 0.0
    %674 = vmatpush1.msra.mxu0 0.0
    %675 = vmatprep.subr.mxu0 0.0
    %676 = vmatpush1.msra.mxu0 0.0
    %677 = vmatprep.subr.mxu0 0.0
    %678 = vmatpush1.msra.mxu0 0.0
    %679 = vmatprep.mubr.f32.mxu0 0.0
    %680 = vmatmul.mubr.f32.gmra.mrb[0].mxu0 %v613
    %v681 = vpop.f32.mrb[0].mxu0
    %v682 = vadd.f32 0.0, %v681
    %v683 = vpop.f32.mrb[0].mxu0
    %v684 = vadd.f32 0.0, %v683
    %685 = vdwg.mxu0
    %v686 = vadd.f32 %v591, %v682
    %v687 = vadd.f32 %v593, %v684
    %v688 = vld [vmem:[#allocation13] sm:$0xff]
    %690 = vset.pattern.permute.xlu0 0
    %691 = vperm.xlu0 %690, %v688
    %v692 = vpop.permute.xlu0 %691
    %v694 = vadd.f32 %v686, %v692
    %v695 = vadd.f32 %v687, %v692
    %v696 = vmax.f32 %v694, 0.0
    %v697 = vmax.f32 %v695, 0.0
    %v698 = vld [vmem:[#allocation14] sm:$0xff]
    %v699 = vld [vmem:[#allocation16] sm:$0xff]
    %701 = vset.pattern.permute.xlu0 0
    %702 = vperm.xlu0 %701, %v699
    %v703 = vpop.permute.xlu0 %702
    %v706 = vsel %vm261, %v698, 0
    %708 = vmatprep.subr.mxu0 %v268
    %709 = vmatpush1.msra.mxu0 %v266
    %710 = vmatprep.subr.mxu0 0.0
    %711 = vmatpush1.msra.mxu0 0.0
    %712 = vmatprep.subr.mxu0 0.0
    %713 = vmatpush1.msra.mxu0 0.0
    %714 = vmatprep.subr.mxu0 0.0
    %715 = vmatpush1.msra.mxu0 0.0
    %716 = vmatprep.subr.mxu0 0.0
    %717 = vmatpush1.msra.mxu0 0.0
    %718 = vmatprep.subr.mxu0 0.0
    %719 = vmatpush1.msra.mxu0 0.0
    %720 = vmatprep.subr.mxu0 0.0
    %721 = vmatpush1.msra.mxu0 0.0
    %722 = vmatprep.subr.mxu0 0.0
    %723 = vmatpush1.msra.mxu0 0.0
    %724 = vmatprep.subr.mxu0 0.0
    %725 = vmatpush1.msra.mxu0 0.0
    %726 = vmatprep.subr.mxu0 0.0
    %727 = vmatpush1.msra.mxu0 0.0
    %728 = vmatprep.subr.mxu0 0.0
    %729 = vmatpush1.msra.mxu0 0.0
    %730 = vmatprep.subr.mxu0 0.0
    %731 = vmatpush1.msra.mxu0 0.0
    %732 = vmatprep.subr.mxu0 0.0
    %733 = vmatpush1.msra.mxu0 0.0
    %734 = vmatprep.subr.mxu0 0.0
    %735 = vmatpush1.msra.mxu0 0.0
    %736 = vmatprep.subr.mxu0 0.0
    %737 = vmatpush1.msra.mxu0 0.0
    %738 = vmatprep.subr.mxu0 0.0
    %739 = vmatpush1.msra.mxu0 0.0
    %740 = vmatprep.subr.mxu0 0.0
    %741 = vmatpush1.msra.mxu0 0.0
    %742 = vmatprep.subr.mxu0 0.0
    %743 = vmatpush1.msra.mxu0 0.0
    %744 = vmatprep.subr.mxu0 0.0
    %745 = vmatpush1.msra.mxu0 0.0
    %746 = vmatprep.subr.mxu0 0.0
    %747 = vmatpush1.msra.mxu0 0.0
    %748 = vmatprep.subr.mxu0 0.0
    %749 = vmatpush1.msra.mxu0 0.0
    %750 = vmatprep.subr.mxu0 0.0
    %751 = vmatpush1.msra.mxu0 0.0
    %752 = vmatprep.subr.mxu0 0.0
    %753 = vmatpush1.msra.mxu0 0.0
    %754 = vmatprep.subr.mxu0 0.0
    %755 = vmatpush1.msra.mxu0 0.0
    %756 = vmatprep.subr.mxu0 0.0
    %757 = vmatpush1.msra.mxu0 0.0
    %758 = vmatprep.subr.mxu0 0.0
    %759 = vmatpush1.msra.mxu0 0.0
    %760 = vmatprep.subr.mxu0 0.0
    %761 = vmatpush1.msra.mxu0 0.0
    %762 = vmatprep.subr.mxu0 0.0
    %763 = vmatpush1.msra.mxu0 0.0
    %764 = vmatprep.subr.mxu0 0.0
    %765 = vmatpush1.msra.mxu0 0.0
    %766 = vmatprep.subr.mxu0 0.0
    %767 = vmatpush1.msra.mxu0 0.0
    %768 = vmatprep.subr.mxu0 0.0
    %769 = vmatpush1.msra.mxu0 0.0
    %770 = vmatprep.subr.mxu0 0.0
    %771 = vmatpush1.msra.mxu0 0.0
    %772 = vmatprep.mubr.f32.mxu0 0.0
    %773 = vmatmul.mubr.f32.gmra.mrb[0].mxu0 %v706
    %v774 = vpop.f32.mrb[0].mxu0
    %v775 = vadd.f32 %v703, %v774
    %v776 = vpop.f32.mrb[0].mxu0
    %v777 = vadd.f32 %v703, %v776
    %778 = vdwg.mxu0
    %v779 = vmax.f32 %v775, 0.0
    %v780 = vmax.f32 %v777, 0.0
    %v781 = vld [vmem:[#allocation17] sm:$0xff]
    %784 = vrot.lane.b32.xlu0 %v779, 2
    %v785 = vpop.permute.xlu0 %784
    %786 = vrot.lane.b32.xlu0 %v780, 2
    %v787 = vpop.permute.xlu0 %786
    %vm788 = vcmask 15360
    %v789 = vsel %vm788, %v785, %v787
    %v792 = vsel %vm788, 0.0, %v785
    %v793 = vsel %vm244, 1, 0
    %v794 = vsel %vm245, 1, 0
    %vm795 = vcmp.eq.s32.totalorder %v793, 1
    %vm796 = vcmp.eq.s32.totalorder %v794, 1
    %v797 = vsel %vm795, %v792, 0.0
    %v798 = vsel %vm796, %v789, 0.0
    %s799 = scalar_lea.vmem [#allocation17], 8
    %v800 = vld [vmem:[%s799] sm:$0xff]
    %801 = vrot.lane.b32.xlu0 %v779, 1
    %v802 = vpop.permute.xlu0 %801
    %803 = vrot.lane.b32.xlu0 %v780, 1
    %v804 = vpop.permute.xlu0 %803
    %v805 = vsel %vm433, %v802, %v804
    %v808 = vsel %vm433, 0.0, %v802
    %v809 = vsel %vm440, %v808, 0.0
    %v810 = vsel %vm441, %v805, 0.0
    %v812 = vsel %vm446, %v800, 0
    %814 = vmatprep.subr.mxu0 %v810
    %815 = vmatpush1.msra.mxu0 %v809
    %816 = vmatprep.subr.mxu0 0.0
    %817 = vmatpush1.msra.mxu0 0.0
    %818 = vmatprep.subr.mxu0 0.0
    %819 = vmatpush1.msra.mxu0 0.0
    %820 = vmatprep.subr.mxu0 0.0
    %821 = vmatpush1.msra.mxu0 0.0
    %822 = vmatprep.subr.mxu0 0.0
    %823 = vmatpush1.msra.mxu0 0.0
    %824 = vmatprep.subr.mxu0 0.0
    %825 = vmatpush1.msra.mxu0 0.0
    %826 = vmatprep.subr.mxu0 0.0
    %827 = vmatpush1.msra.mxu0 0.0
    %828 = vmatprep.subr.mxu0 0.0
    %829 = vmatpush1.msra.mxu0 0.0
    %830 = vmatprep.subr.mxu0 0.0
    %831 = vmatpush1.msra.mxu0 0.0
    %832 = vmatprep.subr.mxu0 0.0
    %833 = vmatpush1.msra.mxu0 0.0
    %834 = vmatprep.subr.mxu0 0.0
    %835 = vmatpush1.msra.mxu0 0.0
    %836 = vmatprep.subr.mxu0 0.0
    %837 = vmatpush1.msra.mxu0 0.0
    %838 = vmatprep.subr.mxu0 0.0
    %839 = vmatpush1.msra.mxu0 0.0
    %840 = vmatprep.subr.mxu0 0.0
    %841 = vmatpush1.msra.mxu0 0.0
    %842 = vmatprep.subr.mxu0 0.0
    %843 = vmatpush1.msra.mxu0 0.0
    %844 = vmatprep.subr.mxu0 0.0
    %845 = vmatpush1.msra.mxu0 0.0
    %846 = vmatprep.subr.mxu0 0.0
    %847 = vmatpush1.msra.mxu0 0.0
    %848 = vmatprep.subr.mxu0 0.0
    %849 = vmatpush1.msra.mxu0 0.0
    %850 = vmatprep.subr.mxu0 0.0
    %851 = vmatpush1.msra.mxu0 0.0
    %852 = vmatprep.subr.mxu0 0.0
    %853 = vmatpush1.msra.mxu0 0.0
    %854 = vmatprep.subr.mxu0 0.0
    %855 = vmatpush1.msra.mxu0 0.0
    %856 = vmatprep.subr.mxu0 0.0
    %857 = vmatpush1.msra.mxu0 0.0
    %858 = vmatprep.subr.mxu0 0.0
    %859 = vmatpush1.msra.mxu0 0.0
    %860 = vmatprep.subr.mxu0 0.0
    %861 = vmatpush1.msra.mxu0 0.0
    %862 = vmatprep.subr.mxu0 0.0
    %863 = vmatpush1.msra.mxu0 0.0
    %864 = vmatprep.subr.mxu0 0.0
    %865 = vmatpush1.msra.mxu0 0.0
    %866 = vmatprep.subr.mxu0 0.0
    %867 = vmatpush1.msra.mxu0 0.0
    %868 = vmatprep.subr.mxu0 0.0
    %869 = vmatpush1.msra.mxu0 0.0
    %870 = vmatprep.subr.mxu0 0.0
    %871 = vmatpush1.msra.mxu0 0.0
    %872 = vmatprep.subr.mxu0 0.0
    %873 = vmatpush1.msra.mxu0 0.0
    %874 = vmatprep.subr.mxu0 0.0
    %875 = vmatpush1.msra.mxu0 0.0
    %876 = vmatprep.subr.mxu0 0.0
    %877 = vmatpush1.msra.mxu0 0.0
    %878 = vmatprep.mubr.f32.mxu0 0.0
    %879 = vmatmul.mubr.f32.gmra.mrb[0].mxu0 %v812
    %v880 = vpop.f32.mrb[0].mxu0
    %v881 = vadd.f32 0.0, %v880
    %v882 = vpop.f32.mrb[0].mxu0
    %v883 = vadd.f32 0.0, %v882
    %884 = vdwg.mxu0
    %v886 = vsel %vm446, %v781, 0
    %888 = vmatprep.subr.mxu0 %v798
    %889 = vmatpush1.msra.mxu0 %v797
    %890 = vmatprep.subr.mxu0 0.0
    %891 = vmatpush1.msra.mxu0 0.0
    %892 = vmatprep.subr.mxu0 0.0
    %893 = vmatpush1.msra.mxu0 0.0
    %894 = vmatprep.subr.mxu0 0.0
    %895 = vmatpush1.msra.mxu0 0.0
    %896 = vmatprep.subr.mxu0 0.0
    %897 = vmatpush1.msra.mxu0 0.0
    %898 = vmatprep.subr.mxu0 0.0
    %899 = vmatpush1.msra.mxu0 0.0
    %900 = vmatprep.subr.mxu0 0.0
    %901 = vmatpush1.msra.mxu0 0.0
    %902 = vmatprep.subr.mxu0 0.0
    %903 = vmatpush1.msra.mxu0 0.0
    %904 = vmatprep.subr.mxu0 0.0
    %905 = vmatpush1.msra.mxu0 0.0
    %906 = vmatprep.subr.mxu0 0.0
    %907 = vmatpush1.msra.mxu0 0.0
    %908 = vmatprep.subr.mxu0 0.0
    %909 = vmatpush1.msra.mxu0 0.0
    %910 = vmatprep.subr.mxu0 0.0
    %911 = vmatpush1.msra.mxu0 0.0
    %912 = vmatprep.subr.mxu0 0.0
    %913 = vmatpush1.msra.mxu0 0.0
    %914 = vmatprep.subr.mxu0 0.0
    %915 = vmatpush1.msra.mxu0 0.0
    %916 = vmatprep.subr.mxu0 0.0
    %917 = vmatpush1.msra.mxu0 0.0
    %918 = vmatprep.subr.mxu0 0.0
    %919 = vmatpush1.msra.mxu0 0.0
    %920 = vmatprep.subr.mxu0 0.0
    %921 = vmatpush1.msra.mxu0 0.0
    %922 = vmatprep.subr.mxu0 0.0
    %923 = vmatpush1.msra.mxu0 0.0
    %924 = vmatprep.subr.mxu0 0.0
    %925 = vmatpush1.msra.mxu0 0.0
    %926 = vmatprep.subr.mxu0 0.0
    %927 = vmatpush1.msra.mxu0 0.0
    %928 = vmatprep.subr.mxu0 0.0
    %929 = vmatpush1.msra.mxu0 0.0
    %930 = vmatprep.subr.mxu0 0.0
    %931 = vmatpush1.msra.mxu0 0.0
    %932 = vmatprep.subr.mxu0 0.0
    %933 = vmatpush1.msra.mxu0 0.0
    %934 = vmatprep.subr.mxu0 0.0
    %935 = vmatpush1.msra.mxu0 0.0
    %936 = vmatprep.subr.mxu0 0.0
    %937 = vmatpush1.msra.mxu0 0.0
    %938 = vmatprep.subr.mxu0 0.0
    %939 = vmatpush1.msra.mxu0 0.0
    %940 = vmatprep.subr.mxu0 0.0
    %941 = vmatpush1.msra.mxu0 0.0
    %942 = vmatprep.subr.mxu0 0.0
    %943 = vmatpush1.msra.mxu0 0.0
    %944 = vmatprep.subr.mxu0 0.0
    %945 = vmatpush1.msra.mxu0 0.0
    %946 = vmatprep.subr.mxu0 0.0
    %947 = vmatpush1.msra.mxu0 0.0
    %948 = vmatprep.subr.mxu0 0.0
    %949 = vmatpush1.msra.mxu0 0.0
    %950 = vmatprep.subr.mxu0 0.0
    %951 = vmatpush1.msra.mxu0 0.0
    %952 = vmatprep.mubr.f32.mxu0 0.0
    %953 = vmatmul.mubr.f32.gmra.mrb[0].mxu0 %v886
    %v954 = vpop.f32.mrb[0].mxu0
    %v955 = vadd.f32 %v881, %v954
    %v956 = vpop.f32.mrb[0].mxu0
    %v957 = vadd.f32 %v883, %v956
    %958 = vdwg.mxu0
    %s959 = scalar_lea.vmem [#allocation17], 16
    %v960 = vld [vmem:[%s959] sm:$0xff]
    %v962 = vsel %vm446, %v960, 0
    %964 = vmatprep.subr.mxu0 %v780
    %965 = vmatpush1.msra.mxu0 %v779
    %966 = vmatprep.subr.mxu0 0.0
    %967 = vmatpush1.msra.mxu0 0.0
    %968 = vmatprep.subr.mxu0 0.0
    %969 = vmatpush1.msra.mxu0 0.0
    %970 = vmatprep.subr.mxu0 0.0
    %971 = vmatpush1.msra.mxu0 0.0
    %972 = vmatprep.subr.mxu0 0.0
    %973 = vmatpush1.msra.mxu0 0.0
    %974 = vmatprep.subr.mxu0 0.0
    %975 = vmatpush1.msra.mxu0 0.0
    %976 = vmatprep.subr.mxu0 0.0
    %977 = vmatpush1.msra.mxu0 0.0
    %978 = vmatprep.subr.mxu0 0.0
    %979 = vmatpush1.msra.mxu0 0.0
    %980 = vmatprep.subr.mxu0 0.0
    %981 = vmatpush1.msra.mxu0 0.0
    %982 = vmatprep.subr.mxu0 0.0
    %983 = vmatpush1.msra.mxu0 0.0
    %984 = vmatprep.subr.mxu0 0.0
    %985 = vmatpush1.msra.mxu0 0.0
    %986 = vmatprep.subr.mxu0 0.0
    %987 = vmatpush1.msra.mxu0 0.0
    %988 = vmatprep.subr.mxu0 0.0
    %989 = vmatpush1.msra.mxu0 0.0
    %990 = vmatprep.subr.mxu0 0.0
    %991 = vmatpush1.msra.mxu0 0.0
    %992 = vmatprep.subr.mxu0 0.0
    %993 = vmatpush1.msra.mxu0 0.0
    %994 = vmatprep.subr.mxu0 0.0
    %995 = vmatpush1.msra.mxu0 0.0
    %996 = vmatprep.subr.mxu0 0.0
    %997 = vmatpush1.msra.mxu0 0.0
    %998 = vmatprep.subr.mxu0 0.0
    %999 = vmatpush1.msra.mxu0 0.0
    %1000 = vmatprep.subr.mxu0 0.0
    %1001 = vmatpush1.msra.mxu0 0.0
    %1002 = vmatprep.subr.mxu0 0.0
    %1003 = vmatpush1.msra.mxu0 0.0
    %1004 = vmatprep.subr.mxu0 0.0
    %1005 = vmatpush1.msra.mxu0 0.0
    %1006 = vmatprep.subr.mxu0 0.0
    %1007 = vmatpush1.msra.mxu0 0.0
    %1008 = vmatprep.subr.mxu0 0.0
    %1009 = vmatpush1.msra.mxu0 0.0
    %1010 = vmatprep.subr.mxu0 0.0
    %1011 = vmatpush1.msra.mxu0 0.0
    %1012 = vmatprep.subr.mxu0 0.0
    %1013 = vmatpush1.msra.mxu0 0.0
    %1014 = vmatprep.subr.mxu0 0.0
    %1015 = vmatpush1.msra.mxu0 0.0
    %1016 = vmatprep.subr.mxu0 0.0
    %1017 = vmatpush1.msra.mxu0 0.0
    %1018 = vmatprep.subr.mxu0 0.0
    %1019 = vmatpush1.msra.mxu0 0.0
    %1020 = vmatprep.subr.mxu0 0.0
    %1021 = vmatpush1.msra.mxu0 0.0
    %1022 = vmatprep.subr.mxu0 0.0
    %1023 = vmatpush1.msra.mxu0 0.0
    %1024 = vmatprep.subr.mxu0 0.0
    %1025 = vmatpush1.msra.mxu0 0.0
    %1026 = vmatprep.subr.mxu0 0.0
    %1027 = vmatpush1.msra.mxu0 0.0
    %1028 = vmatprep.mubr.f32.mxu0 0.0
    %1029 = vmatmul.mubr.f32.gmra.mrb[0].mxu0 %v962
    %v1030 = vpop.f32.mrb[0].mxu0
    %v1031 = vadd.f32 0.0, %v1030
    %v1032 = vpop.f32.mrb[0].mxu0
    %v1033 = vadd.f32 0.0, %v1032
    %1034 = vdwg.mxu0
    %v1035 = vadd.f32 %v955, %v1031
    %v1036 = vadd.f32 %v957, %v1033
    %s1037 = scalar_lea.vmem [#allocation17], 24
    %v1038 = vld [vmem:[%s1037] sm:$0xff]
    %1039 = vrot.lane.b32.xlu0 %v779, 127
    %v1040 = vpop.permute.xlu0 %1039
    %1041 = vrot.lane.b32.xlu0 %v780, 127
    %v1042 = vpop.permute.xlu0 %1041
    %v1043 = vsel %vm601, %v1040, %v1042
    %v1046 = vsel %vm601, %v1042, 0.0
    %v1047 = vsel %vm608, %v1043, 0.0
    %v1048 = vsel %vm609, %v1046, 0.0
    %v1050 = vsel %vm446, %v1038, 0
    %1052 = vmatprep.subr.mxu0 %v1048
    %1053 = vmatpush1.msra.mxu0 %v1047
    %1054 = vmatprep.subr.mxu0 0.0
    %1055 = vmatpush1.msra.mxu0 0.0
    %1056 = vmatprep.subr.mxu0 0.0
    %1057 = vmatpush1.msra.mxu0 0.0
    %1058 = vmatprep.subr.mxu0 0.0
    %1059 = vmatpush1.msra.mxu0 0.0
    %1060 = vmatprep.subr.mxu0 0.0
    %1061 = vmatpush1.msra.mxu0 0.0
    %1062 = vmatprep.subr.mxu0 0.0
    %1063 = vmatpush1.msra.mxu0 0.0
    %1064 = vmatprep.subr.mxu0 0.0
    %1065 = vmatpush1.msra.mxu0 0.0
    %1066 = vmatprep.subr.mxu0 0.0
    %1067 = vmatpush1.msra.mxu0 0.0
    %1068 = vmatprep.subr.mxu0 0.0
    %1069 = vmatpush1.msra.mxu0 0.0
    %1070 = vmatprep.subr.mxu0 0.0
    %1071 = vmatpush1.msra.mxu0 0.0
    %1072 = vmatprep.subr.mxu0 0.0
    %1073 = vmatpush1.msra.mxu0 0.0
    %1074 = vmatprep.subr.mxu0 0.0
    %1075 = vmatpush1.msra.mxu0 0.0
    %1076 = vmatprep.subr.mxu0 0.0
    %1077 = vmatpush1.msra.mxu0 0.0
    %1078 = vmatprep.subr.mxu0 0.0
    %1079 = vmatpush1.msra.mxu0 0.0
    %1080 = vmatprep.subr.mxu0 0.0
    %1081 = vmatpush1.msra.mxu0 0.0
    %1082 = vmatprep.subr.mxu0 0.0
    %1083 = vmatpush1.msra.mxu0 0.0
    %1084 = vmatprep.subr.mxu0 0.0
    %1085 = vmatpush1.msra.mxu0 0.0
    %1086 = vmatprep.subr.mxu0 0.0
    %1087 = vmatpush1.msra.mxu0 0.0
    %1088 = vmatprep.subr.mxu0 0.0
    %1089 = vmatpush1.msra.mxu0 0.0
    %1090 = vmatprep.subr.mxu0 0.0
    %1091 = vmatpush1.msra.mxu0 0.0
    %1092 = vmatprep.subr.mxu0 0.0
    %1093 = vmatpush1.msra.mxu0 0.0
    %1094 = vmatprep.subr.mxu0 0.0
    %1095 = vmatpush1.msra.mxu0 0.0
    %1096 = vmatprep.subr.mxu0 0.0
    %1097 = vmatpush1.msra.mxu0 0.0
    %1098 = vmatprep.subr.mxu0 0.0
    %1099 = vmatpush1.msra.mxu0 0.0
    %1100 = vmatprep.subr.mxu0 0.0
    %1101 = vmatpush1.msra.mxu0 0.0
    %1102 = vmatprep.subr.mxu0 0.0
    %1103 = vmatpush1.msra.mxu0 0.0
    %1104 = vmatprep.subr.mxu0 0.0
    %1105 = vmatpush1.msra.mxu0 0.0
    %1106 = vmatprep.subr.mxu0 0.0
    %1107 = vmatpush1.msra.mxu0 0.0
    %1108 = vmatprep.subr.mxu0 0.0
    %1109 = vmatpush1.msra.mxu0 0.0
    %1110 = vmatprep.subr.mxu0 0.0
    %1111 = vmatpush1.msra.mxu0 0.0
    %1112 = vmatprep.subr.mxu0 0.0
    %1113 = vmatpush1.msra.mxu0 0.0
    %1114 = vmatprep.subr.mxu0 0.0
    %1115 = vmatpush1.msra.mxu0 0.0
    %1116 = vmatprep.mubr.f32.mxu0 0.0
    %1117 = vmatmul.mubr.f32.gmra.mrb[0].mxu0 %v1050
    %v1118 = vpop.f32.mrb[0].mxu0
    %v1119 = vadd.f32 0.0, %v1118
    %v1120 = vpop.f32.mrb[0].mxu0
    %v1121 = vadd.f32 0.0, %v1120
    %1122 = vdwg.mxu0
    %v1123 = vadd.f32 %v1035, %v1119
    %v1124 = vadd.f32 %v1036, %v1121
    %s1125 = scalar_lea.vmem [#allocation17], 32
    %v1126 = vld [vmem:[%s1125] sm:$0xff]
    %1127 = vrot.lane.b32.xlu0 %v779, 126
    %v1128 = vpop.permute.xlu0 %1127
    %1129 = vrot.lane.b32.xlu0 %v780, 126
    %v1130 = vpop.permute.xlu0 %1129
    %vm1131 = vcmask 1031168
    %v1132 = vsel %vm1131, %v1128, %v1130
    %v1135 = vsel %vm1131, %v1130, 0.0
    %v1136 = vsel %vm250, 1, 0
    %v1137 = vsel %vm251, 1, 0
    %vm1138 = vcmp.eq.s32.totalorder %v1136, 1
    %vm1139 = vcmp.eq.s32.totalorder %v1137, 1
    %v1140 = vsel %vm1138, %v1132, 0.0
    %v1141 = vsel %vm1139, %v1135, 0.0
    %v1143 = vsel %vm446, %v1126, 0
    %1145 = vmatprep.subr.mxu0 %v1141
    %1146 = vmatpush1.msra.mxu0 %v1140
    %1147 = vmatprep.subr.mxu0 0.0
    %1148 = vmatpush1.msra.mxu0 0.0
    %1149 = vmatprep.subr.mxu0 0.0
    %1150 = vmatpush1.msra.mxu0 0.0
    %1151 = vmatprep.subr.mxu0 0.0
    %1152 = vmatpush1.msra.mxu0 0.0
    %1153 = vmatprep.subr.mxu0 0.0
    %1154 = vmatpush1.msra.mxu0 0.0
    %1155 = vmatprep.subr.mxu0 0.0
    %1156 = vmatpush1.msra.mxu0 0.0
    %1157 = vmatprep.subr.mxu0 0.0
    %1158 = vmatpush1.msra.mxu0 0.0
    %1159 = vmatprep.subr.mxu0 0.0
    %1160 = vmatpush1.msra.mxu0 0.0
    %1161 = vmatprep.subr.mxu0 0.0
    %1162 = vmatpush1.msra.mxu0 0.0
    %1163 = vmatprep.subr.mxu0 0.0
    %1164 = vmatpush1.msra.mxu0 0.0
    %1165 = vmatprep.subr.mxu0 0.0
    %1166 = vmatpush1.msra.mxu0 0.0
    %1167 = vmatprep.subr.mxu0 0.0
    %1168 = vmatpush1.msra.mxu0 0.0
    %1169 = vmatprep.subr.mxu0 0.0
    %1170 = vmatpush1.msra.mxu0 0.0
    %1171 = vmatprep.subr.mxu0 0.0
    %1172 = vmatpush1.msra.mxu0 0.0
    %1173 = vmatprep.subr.mxu0 0.0
    %1174 = vmatpush1.msra.mxu0 0.0
    %1175 = vmatprep.subr.mxu0 0.0
    %1176 = vmatpush1.msra.mxu0 0.0
    %1177 = vmatprep.subr.mxu0 0.0
    %1178 = vmatpush1.msra.mxu0 0.0
    %1179 = vmatprep.subr.mxu0 0.0
    %1180 = vmatpush1.msra.mxu0 0.0
    %1181 = vmatprep.subr.mxu0 0.0
    %1182 = vmatpush1.msra.mxu0 0.0
    %1183 = vmatprep.subr.mxu0 0.0
    %1184 = vmatpush1.msra.mxu0 0.0
    %1185 = vmatprep.subr.mxu0 0.0
    %1186 = vmatpush1.msra.mxu0 0.0
    %1187 = vmatprep.subr.mxu0 0.0
    %1188 = vmatpush1.msra.mxu0 0.0
    %1189 = vmatprep.subr.mxu0 0.0
    %1190 = vmatpush1.msra.mxu0 0.0
    %1191 = vmatprep.subr.mxu0 0.0
    %1192 = vmatpush1.msra.mxu0 0.0
    %1193 = vmatprep.subr.mxu0 0.0
    %1194 = vmatpush1.msra.mxu0 0.0
    %1195 = vmatprep.subr.mxu0 0.0
    %1196 = vmatpush1.msra.mxu0 0.0
    %1197 = vmatprep.subr.mxu0 0.0
    %1198 = vmatpush1.msra.mxu0 0.0
    %1199 = vmatprep.subr.mxu0 0.0
    %1200 = vmatpush1.msra.mxu0 0.0
    %1201 = vmatprep.subr.mxu0 0.0
    %1202 = vmatpush1.msra.mxu0 0.0
    %1203 = vmatprep.subr.mxu0 0.0
    %1204 = vmatpush1.msra.mxu0 0.0
    %1205 = vmatprep.subr.mxu0 0.0
    %1206 = vmatpush1.msra.mxu0 0.0
    %1207 = vmatprep.subr.mxu0 0.0
    %1208 = vmatpush1.msra.mxu0 0.0
    %1209 = vmatprep.mubr.f32.mxu0 0.0
    %1210 = vmatmul.mubr.f32.gmra.mrb[0].mxu0 %v1143
    %v1211 = vpop.f32.mrb[0].mxu0
    %v1212 = vadd.f32 0.0, %v1211
    %v1213 = vpop.f32.mrb[0].mxu0
    %v1214 = vadd.f32 0.0, %v1213
    %1215 = vdwg.mxu0
    %v1216 = vadd.f32 %v1123, %v1212
    %v1217 = vadd.f32 %v1124, %v1214
    %v1218 = vld [vmem:[#allocation19] sm:$0xff]
    %1220 = vset.pattern.permute.xlu0 0
    %1221 = vperm.xlu0 %1220, %v1218
    %v1222 = vpop.permute.xlu0 %1221
    %v1224 = vadd.f32 %v1216, %v1222
    %v1225 = vadd.f32 %v1217, %v1222
    %v1226 = vmax.f32 %v1224, 0.0
    %v1227 = vmax.f32 %v1225, 0.0
    %1228 = vrot.lane.b32.xlu0 %v216, 1
    %v1229 = vpop.permute.xlu0 %1228
    %1230 = vrot.lane.b32.xlu0 %v260, 1
    %v1231 = vpop.permute.xlu0 %1230
    %v1232 = vsel %vm433, %v1229, %v1231
    %v1235 = vsel %vm433, 0.0, %v1229
    %v1236 = vsel %vm440, %v1235, -inf
    %v1237 = vsel %vm441, %v1232, -inf
    %v1239 = vmax.f32 %v1236, %v216
    %v1240 = vmax.f32 %v1237, %v260
    %1241 = vrot.lane.b32.xlu0 %v216, 127
    %v1242 = vpop.permute.xlu0 %1241
    %1243 = vrot.lane.b32.xlu0 %v260, 127
    %v1244 = vpop.permute.xlu0 %1243
    %v1245 = vsel %vm601, %v1242, %v1244
    %v1248 = vsel %vm601, %v1244, 0.0
    %v1249 = vsel %vm608, %v1245, -inf
    %v1250 = vsel %vm609, %v1248, -inf
    %v1251 = vmax.f32 %v1239, %v1249
    %v1252 = vmax.f32 %v1240, %v1250
    %v1253 = vld [vmem:[#allocation20] sm:$0xff]
    %v1254 = vld [vmem:[#allocation22] sm:$0xff]
    %1256 = vset.pattern.permute.xlu0 0
    %1257 = vperm.xlu0 %1256, %v1254
    %v1258 = vpop.permute.xlu0 %1257
    %v1261 = vsel %vm261, %v1253, 0
    %v1264 = vsel %vm265, %v1251, 0
    %v1267 = vsel %vm265, %v1252, 0
    %1269 = vmatprep.subr.mxu0 %v1267
    %1270 = vmatpush1.msra.mxu0 %v1264
    %1271 = vmatprep.subr.mxu0 0.0
    %1272 = vmatpush1.msra.mxu0 0.0
    %1273 = vmatprep.subr.mxu0 0.0
    %1274 = vmatpush1.msra.mxu0 0.0
    %1275 = vmatprep.subr.mxu0 0.0
    %1276 = vmatpush1.msra.mxu0 0.0
    %1277 = vmatprep.subr.mxu0 0.0
    %1278 = vmatpush1.msra.mxu0 0.0
    %1279 = vmatprep.subr.mxu0 0.0
    %1280 = vmatpush1.msra.mxu0 0.0
    %1281 = vmatprep.subr.mxu0 0.0
    %1282 = vmatpush1.msra.mxu0 0.0
    %1283 = vmatprep.subr.mxu0 0.0
    %1284 = vmatpush1.msra.mxu0 0.0
    %1285 = vmatprep.subr.mxu0 0.0
    %1286 = vmatpush1.msra.mxu0 0.0
    %1287 = vmatprep.subr.mxu0 0.0
    %1288 = vmatpush1.msra.mxu0 0.0
    %1289 = vmatprep.subr.mxu0 0.0
    %1290 = vmatpush1.msra.mxu0 0.0
    %1291 = vmatprep.subr.mxu0 0.0
    %1292 = vmatpush1.msra.mxu0 0.0
    %1293 = vmatprep.subr.mxu0 0.0
    %1294 = vmatpush1.msra.mxu0 0.0
    %1295 = vmatprep.subr.mxu0 0.0
    %1296 = vmatpush1.msra.mxu0 0.0
    %1297 = vmatprep.subr.mxu0 0.0
    %1298 = vmatpush1.msra.mxu0 0.0
    %1299 = vmatprep.subr.mxu0 0.0
    %1300 = vmatpush1.msra.mxu0 0.0
    %1301 = vmatprep.subr.mxu0 0.0
    %1302 = vmatpush1.msra.mxu0 0.0
    %1303 = vmatprep.subr.mxu0 0.0
    %1304 = vmatpush1.msra.mxu0 0.0
    %1305 = vmatprep.subr.mxu0 0.0
    %1306 = vmatpush1.msra.mxu0 0.0
    %1307 = vmatprep.subr.mxu0 0.0
    %1308 = vmatpush1.msra.mxu0 0.0
    %1309 = vmatprep.subr.mxu0 0.0
    %1310 = vmatpush1.msra.mxu0 0.0
    %1311 = vmatprep.subr.mxu0 0.0
    %1312 = vmatpush1.msra.mxu0 0.0
    %1313 = vmatprep.subr.mxu0 0.0
    %1314 = vmatpush1.msra.mxu0 0.0
    %1315 = vmatprep.subr.mxu0 0.0
    %1316 = vmatpush1.msra.mxu0 0.0
    %1317 = vmatprep.subr.mxu0 0.0
    %1318 = vmatpush1.msra.mxu0 0.0
    %1319 = vmatprep.subr.mxu0 0.0
    %1320 = vmatpush1.msra.mxu0 0.0
    %1321 = vmatprep.subr.mxu0 0.0
    %1322 = vmatpush1.msra.mxu0 0.0
    %1323 = vmatprep.subr.mxu0 0.0
    %1324 = vmatpush1.msra.mxu0 0.0
    %1325 = vmatprep.subr.mxu0 0.0
    %1326 = vmatpush1.msra.mxu0 0.0
    %1327 = vmatprep.subr.mxu0 0.0
    %1328 = vmatpush1.msra.mxu0 0.0
    %1329 = vmatprep.subr.mxu0 0.0
    %1330 = vmatpush1.msra.mxu0 0.0
    %1331 = vmatprep.subr.mxu0 0.0
    %1332 = vmatpush1.msra.mxu0 0.0
    %1333 = vmatprep.mubr.f32.mxu0 0.0
    %1334 = vmatmul.mubr.f32.gmra.mrb[0].mxu0 %v1261
    %v1335 = vpop.f32.mrb[0].mxu0
    %v1336 = vadd.f32 %v1258, %v1335
    %v1337 = vpop.f32.mrb[0].mxu0
    %v1338 = vadd.f32 %v1258, %v1337
    %1339 = vdwg.mxu0
    %v1340 = vmax.f32 %v1336, 0.0
    %v1341 = vmax.f32 %v1338, 0.0
    %v1342 = vld [vmem:[#allocation23] sm:$0xff]
    %v1343 = vld [vmem:[#allocation23 + $0x8] sm:$0xff]
    %v1344 = vld [vmem:[#allocation23 + $0x10] sm:$0xff]
    %v1345 = vld [vmem:[#allocation23 + $0x18] sm:$0xff]
    %v1346 = vld [vmem:[#allocation23 + $0x20] sm:$0xff]
    %v1347 = vld [vmem:[#allocation23 + $0x28] sm:$0xff]
    %v1348 = vld [vmem:[#allocation23 + $0x30] sm:$0xff]
    %v1349 = vld [vmem:[#allocation23 + $0x38] sm:$0xff]
    %v1350 = vld [vmem:[#allocation23 + $0x40] sm:$0xff]
    %v1351 = vld [vmem:[#allocation23 + $0x48] sm:$0xff]
    %v1352 = vld [vmem:[#allocation23 + $0x50] sm:$0xff]
    %v1353 = vld [vmem:[#allocation23 + $0x58] sm:$0xff]
    %v1354 = vld [vmem:[#allocation23 + $0x60] sm:$0xff]
    %v1355 = vld [vmem:[#allocation23 + $0x68] sm:$0xff]
    %v1356 = vld [vmem:[#allocation23 + $0x70] sm:$0xff]
    %v1357 = vld [vmem:[#allocation23 + $0x78] sm:$0xff]
    %v1358 = vld [vmem:[#allocation23 + $0x80] sm:$0xff]
    %v1359 = vld [vmem:[#allocation23 + $0x88] sm:$0xff]
    %v1360 = vld [vmem:[#allocation23 + $0x90] sm:$0xff]
    %v1361 = vld [vmem:[#allocation23 + $0x98] sm:$0xff]
    %v1362 = vld [vmem:[#allocation23 + $0xa0] sm:$0xff]
    %v1363 = vld [vmem:[#allocation23 + $0xa8] sm:$0xff]
    %v1364 = vld [vmem:[#allocation23 + $0xb0] sm:$0xff]
    %v1365 = vld [vmem:[#allocation23 + $0xb8] sm:$0xff]
    %v1366 = vld [vmem:[#allocation23 + $0xc0] sm:$0xff]
    %v1367 = vld [vmem:[#allocation23 + $0xc8] sm:$0xff]
    %v1368 = vld [vmem:[#allocation23 + $0xd0] sm:$0xff]
    %v1369 = vld [vmem:[#allocation23 + $0xd8] sm:$0xff]
    %v1370 = vld [vmem:[#allocation23 + $0xe0] sm:$0xff]
    %v1371 = vld [vmem:[#allocation23 + $0xe8] sm:$0xff]
    %v1372 = vld [vmem:[#allocation23 + $0xf0] sm:$0xff]
    %v1373 = vld [vmem:[#allocation23 + $0xf8] sm:$0xff]
    %1374 = vmatprep.subr.mxu0 0.0
    %1375 = vmatpush1.msra.mxu0 %v1342
    %1376 = vmatprep.subr.mxu0 0.0
    %1377 = vmatpush1.msra.mxu0 %v1343
    %1378 = vmatprep.subr.mxu0 0.0
    %1379 = vmatpush1.msra.mxu0 %v1344
    %1380 = vmatprep.subr.mxu0 0.0
    %1381 = vmatpush1.msra.mxu0 %v1345
    %1382 = vmatprep.subr.mxu0 0.0
    %1383 = vmatpush1.msra.mxu0 %v1346
    %1384 = vmatprep.subr.mxu0 0.0
    %1385 = vmatpush1.msra.mxu0 %v1347
    %1386 = vmatprep.subr.mxu0 0.0
    %1387 = vmatpush1.msra.mxu0 %v1348
    %1388 = vmatprep.subr.mxu0 0.0
    %1389 = vmatpush1.msra.mxu0 %v1349
    %1390 = vmatprep.subr.mxu0 0.0
    %1391 = vmatpush1.msra.mxu0 %v1350
    %1392 = vmatprep.subr.mxu0 0.0
    %1393 = vmatpush1.msra.mxu0 %v1351
    %1394 = vmatprep.subr.mxu0 0.0
    %1395 = vmatpush1.msra.mxu0 %v1352
    %1396 = vmatprep.subr.mxu0 0.0
    %1397 = vmatpush1.msra.mxu0 %v1353
    %1398 = vmatprep.subr.mxu0 0.0
    %1399 = vmatpush1.msra.mxu0 %v1354
    %1400 = vmatprep.subr.mxu0 0.0
    %1401 = vmatpush1.msra.mxu0 %v1355
    %1402 = vmatprep.subr.mxu0 0.0
    %1403 = vmatpush1.msra.mxu0 %v1356
    %1404 = vmatprep.subr.mxu0 0.0
    %1405 = vmatpush1.msra.mxu0 %v1357
    %1406 = vmatprep.subr.mxu0 0.0
    %1407 = vmatpush1.msra.mxu0 %v1358
    %1408 = vmatprep.subr.mxu0 0.0
    %1409 = vmatpush1.msra.mxu0 %v1359
    %1410 = vmatprep.subr.mxu0 0.0
    %1411 = vmatpush1.msra.mxu0 %v1360
    %1412 = vmatprep.subr.mxu0 0.0
    %1413 = vmatpush1.msra.mxu0 %v1361
    %1414 = vmatprep.subr.mxu0 0.0
    %1415 = vmatpush1.msra.mxu0 %v1362
    %1416 = vmatprep.subr.mxu0 0.0
    %1417 = vmatpush1.msra.mxu0 %v1363
    %1418 = vmatprep.subr.mxu0 0.0
    %1419 = vmatpush1.msra.mxu0 %v1364
    %1420 = vmatprep.subr.mxu0 0.0
    %1421 = vmatpush1.msra.mxu0 %v1365
    %1422 = vmatprep.subr.mxu0 0.0
    %1423 = vmatpush1.msra.mxu0 %v1366
    %1424 = vmatprep.subr.mxu0 0.0
    %1425 = vmatpush1.msra.mxu0 %v1367
    %1426 = vmatprep.subr.mxu0 0.0
    %1427 = vmatpush1.msra.mxu0 %v1368
    %1428 = vmatprep.subr.mxu0 0.0
    %1429 = vmatpush1.msra.mxu0 %v1369
    %1430 = vmatprep.subr.mxu0 0.0
    %1431 = vmatpush1.msra.mxu0 %v1370
    %1432 = vmatprep.subr.mxu0 0.0
    %1433 = vmatpush1.msra.mxu0 %v1371
    %1434 = vmatprep.subr.mxu0 0.0
    %1435 = vmatpush1.msra.mxu0 %v1372
    %1436 = vmatprep.subr.mxu0 0.0
    %1437 = vmatpush1.msra.mxu0 %v1373
    %1438 = vmatprep.mubr.f32.mxu0 %v342
    %1439 = vmatmul.mubr.f32.gmra.mrb[0].mxu0 %v341
    %v1440 = vpop.f32.mrb[0].mxu0
    %v1441 = vadd.f32 0.0, %v1440
    %v1442 = vpop.f32.mrb[0].mxu0
    %1443 = vmatprep.mubr.f32.mxu0 %v697
    %1444 = vmatmul.mubr.f32.gmra.mrb[0].mxu0 %v696
    %v1445 = vpop.f32.mrb[0].mxu0
    %v1446 = vadd.f32 0.0, %v1445
    %v1447 = vpop.f32.mrb[0].mxu0
    %1448 = vmatprep.mubr.f32.mxu0 %v1227
    %1449 = vmatmul.mubr.f32.gmra.mrb[0].mxu0 %v1226
    %v1450 = vpop.f32.mrb[0].mxu0
    %v1451 = vadd.f32 0.0, %v1450
    %v1452 = vpop.f32.mrb[0].mxu0
    %1453 = vmatprep.mubr.f32.mxu0 %v1341
    %1454 = vmatmul.mubr.f32.gmra.mrb[0].mxu0 %v1340
    %v1455 = vpop.f32.mrb[0].mxu0
    %v1456 = vadd.f32 0.0, %v1455
    %v1457 = vpop.f32.mrb[0].mxu0
    %1458 = vdwg.mxu0
    %1459 = vst.msk [vmem:[#allocation25] sm:$0xff] %vm446, %v1441
    %1460 = vst.msk [vmem:[#allocation25 + $0x8] sm:$0xff] %vm446, %v1446
    %1461 = vst.msk [vmem:[#allocation25 + $0x10] sm:$0xff] %vm446, %v1451
    %1462 = vst.msk [vmem:[#allocation25 + $0x18] sm:$0xff] %vm446, %v1456
    // Predicated region
    $region114: #{tpu_custom_call.1} parent=1 // pred_check
      _
    $region115: #{tpu_custom_call.1} parent=1 // pred_check_branch
      %1464 = sbr.rel (0) target = $region117
    $region116: #{tpu_custom_call.1} parent=1 // pred_region
      %s1466 = ssub.s32 512, 512
      %1467 = vsyncadd [#allocation4], %s1466
      %s1468 = sshll.u32 [#allocation25], 4
      %s1469 = int_to_ptr.vmem [resolvable:$true] %s1468
      %1474 = dma.vmem_to_hbm [thread:$0]  %s1469, 512, %s14, [#allocation4], 128, 128, 8
    $region117: #{tpu_custom_call.1} parent=1 // pred_fallthru
      _
    // Predicated region
    $region118: #{tpu_custom_call.1} parent=1 // pred_check
      _
    $region119: #{tpu_custom_call.1} parent=1 // pred_check_branch
      %1476 = sbr.rel (0) target = $region121
    $region120: #{tpu_custom_call.1} parent=1 // pred_region
      %1477 = dma.done [#allocation4], 512
    $region121: #{tpu_custom_call.1} parent=1 // pred_fallthru
      _
    %1478 = vsyncpa [#allocation3], 1
    %1479 = vsyncpa [#allocation6], 1
    %1480 = vsyncpa [#allocation9], 1
    %1481 = vsyncpa [#allocation12], 1
    %1482 = vsyncpa [#allocation15], 1
    %1483 = vsyncpa [#allocation18], 1
    %1484 = vsyncpa [#allocation21], 1
    %1485 = vsyncpa [#allocation24], 1
    %1486 = vsyncpa [#allocation4], 1

</llo_original>
